<compile_context>
chip_gen: v7x
topology: tpu7x:2x2x1
jax: 0.10.0
libtpu: 0.0.40
codegen_flags: <defaults>
</compile_context>

<pallas_src>
import functools

import jax
import jax.numpy as jnp
from jax.experimental import pallas as pl
from jax.experimental.pallas import tpu as pltpu


def _image_proj_kernel(x_ref, w_ref, b_ref, g_ref, beta_ref, o_ref, *,
                       tokens_per_tile, dim, eps):
    # x_ref:    (B, E)        resident across all grid steps
    # w_ref:    (E, TPT*D)    per-step weight tile (pipelined DMA, the hot operand)
    # b_ref:    (1, TPT*D)    per-step bias slice
    # g_ref:    (1, D)        LayerNorm gamma (resident)
    # beta_ref: (1, D)        LayerNorm beta  (resident)
    # o_ref:    (B, TPT, D)   per-step output tile
    x = x_ref[...]
    w = w_ref[...]

    # MXU matmul in native dtype (bf16-friendly), f32 accumulation.
    y = jnp.dot(x, w, preferred_element_type=jnp.float32)
    y = y + b_ref[...].astype(jnp.float32)

    g = g_ref[...].astype(jnp.float32)
    beta = beta_ref[...].astype(jnp.float32)

    # Per-token LayerNorm on lane-aligned (B, D) slices (D is a multiple of
    # 128, so these are pure lane slices — no relayout).
    for t in range(tokens_per_tile):
        yt = y[:, t * dim:(t + 1) * dim]                       # (B, D)
        mean = jnp.mean(yt, axis=-1, keepdims=True)
        centered = yt - mean
        var = jnp.mean(centered * centered, axis=-1, keepdims=True)
        out = centered * jax.lax.rsqrt(var + eps) * g + beta
        o_ref[:, t, :] = out.astype(o_ref.dtype)


def prepare_image_proj_params(proj_w, proj_b, ln_gamma, ln_beta):
    """One-time parameter prep (call at load time, NOT per forward pass).

    proj_w: (T*D, E) PyTorch nn.Linear layout (out, in)  -> returned as (E, T*D)
    """
    TD, _E = proj_w.shape
    return (jnp.transpose(proj_w),          # (E, T*D): kernel does plain x @ W
            proj_b.reshape(1, TD),
            ln_gamma.reshape(1, -1),
            ln_beta.reshape(1, -1))


def _pick_tokens_per_tile(T, D, E, itemsize, max_w_tile_bytes=6 * 1024 * 1024):
    """Largest legal tokens-per-tile whose weight tile fits the VMEM budget.

    Legal: divides T and is either == T or a multiple of 8 (sublane rule for
    the (B, TPT, D) output block). Double-buffered, a 6 MiB W tile stays well
    under the scoped-VMEM defaults on v5e/v6e/v7x.
    """
    legal = [t for t in range(T, 0, -1)
             if T % t == 0 and (t == T or t % 8 == 0)]
    for t in legal:
        if E * t * D * itemsize <= max_w_tile_bytes:
            return t
    return legal[-1]


def image_proj_model(image_embeds, proj_w_t, proj_b2, ln_gamma2, ln_beta2, *,
                     clip_extra_context_tokens, cross_attention_dim,
                     eps=1e-5, tokens_per_tile=None):
    """
    image_embeds: (B, clip_embeddings_dim)
    proj_w_t:     (E, T*D)  pre-transposed weight (from prepare_image_proj_params)
    proj_b2:      (1, T*D)
    ln_gamma2:    (1, D)
    ln_beta2:     (1, D)
    returns:      (B, T, D)
    """
    B, E = image_embeds.shape
    T = clip_extra_context_tokens
    D = cross_attention_dim
    TD = T * D
    assert proj_w_t.shape == (E, TD)
    assert proj_b2.shape == (1, TD)

    dtype = proj_w_t.dtype
    # Matches torch: cast the input to the projection parameters' dtype.
    x = image_embeds.astype(dtype)

    itemsize = jnp.dtype(dtype).itemsize
    if tokens_per_tile is None:
        tokens_per_tile = _pick_tokens_per_tile(T, D, E, itemsize)
    assert T % tokens_per_tile == 0
    n_tiles = T // tokens_per_tile
    TN = tokens_per_tile * D
    # Lane-alignment of the streamed W / bias tiles (full-extent tile is always ok).
    assert n_tiles == 1 or D % 128 == 0, "cross_attention_dim must be a multiple of 128 to tile"

    kernel = functools.partial(_image_proj_kernel,
                               tokens_per_tile=tokens_per_tile, dim=D, eps=eps)

    # VMEM budget: double-buffered W tile dominates; leave headroom for
    # x / bias / output blocks. Clamp to stay within v7x's 64 MiB physical VMEM.
    vmem_bytes = (2 * (E * TN + TN + B * TN) + B * E + 2 * D) * itemsize
    vmem_limit = int(min(max(vmem_bytes + (4 << 20), 16 << 20), 48 << 20))

    cost = pl.CostEstimate(
        flops=2 * B * E * TD + 8 * B * TD,
        transcendentals=B * T,
        bytes_accessed=(E * TD + B * E + TD + 2 * D) * itemsize
                       + B * TD * itemsize)

    out = pl.pallas_call(
        kernel,
        out_shape=jax.ShapeDtypeStruct((B, T, D), dtype),
        grid_spec=pltpu.PrefetchScalarGridSpec(
            num_scalar_prefetch=0,
            grid=(n_tiles,),
            in_specs=[
                pl.BlockSpec((B, E), lambda j: (0, 0)),        # x: resident
                pl.BlockSpec((E, TN), lambda j: (0, j)),       # W tile: streamed
                pl.BlockSpec((1, TN), lambda j: (0, j)),       # bias slice: streamed
                pl.BlockSpec((1, D), lambda j: (0, 0)),        # gamma: resident
                pl.BlockSpec((1, D), lambda j: (0, 0)),        # beta: resident
            ],
            out_specs=pl.BlockSpec((B, tokens_per_tile, D), lambda j: (0, j, 0)),
        ),
        compiler_params=pltpu.CompilerParams(
            dimension_semantics=("parallel",),      # independent token tiles (2 TCs on v7x)
            vmem_limit_bytes=vmem_limit),
        cost_estimate=cost,
    )(x, proj_w_t, proj_b2, ln_gamma2, ln_beta2)

    return out


def _reference(image_embeds, proj_w, proj_b, ln_gamma, ln_beta, T, D, eps=1e-5):
    # Pure-JAX reference in f32 on the same (possibly bf16) parameter values.
    x = image_embeds.astype(proj_w.dtype).astype(jnp.float32)
    w = proj_w.astype(jnp.float32)
    y = x @ w.T + proj_b.astype(jnp.float32)
    y = y.reshape(-1, T, D)
    mean = jnp.mean(y, axis=-1, keepdims=True)
    var = jnp.mean((y - mean) ** 2, axis=-1, keepdims=True)
    return ((y - mean) * jax.lax.rsqrt(var + eps)
            * ln_gamma.astype(jnp.float32) + ln_beta.astype(jnp.float32))


if __name__ == "__main__":
    # Small, module-consistent shapes (constructor params are free choices).
    B = 8          # batch
    E = 256        # clip_embeddings_dim
    D = 128        # cross_attention_dim
    T = 16         # clip_extra_context_tokens

    key = jax.random.PRNGKey(0)
    k_x, k_w, k_b = jax.random.split(key, 3)

    image_embeds = jax.random.normal(k_x, (B, E), dtype=jnp.float32)

    # Deterministic synthetic params in bf16 (MXU-native; halves the dominant
    # weight DMA, which is the binding resource on all generations).
    proj_w = (jax.random.normal(k_w, (T * D, E), dtype=jnp.float32) * 0.02
              ).astype(jnp.bfloat16)
    proj_b = (jax.random.normal(k_b, (T * D,), dtype=jnp.float32) * 0.01
              ).astype(jnp.bfloat16)
    ln_gamma = jnp.ones((D,), dtype=jnp.bfloat16)
    ln_beta = jnp.zeros((D,), dtype=jnp.bfloat16)

    # One-time prep: weight transpose hoisted out of the forward path.
    proj_w_t, proj_b2, ln_gamma2, ln_beta2 = prepare_image_proj_params(
        proj_w, proj_b, ln_gamma, ln_beta)

    out = image_proj_model(image_embeds, proj_w_t, proj_b2, ln_gamma2, ln_beta2,
                           clip_extra_context_tokens=T,
                           cross_attention_dim=D,
                           tokens_per_tile=8)   # 2 grid steps -> pipelined W DMA
    out = jax.block_until_ready(out)

    ref = _reference(image_embeds, proj_w, proj_b, ln_gamma, ln_beta, T, D)
    assert out.shape == (B, T, D)
    max_err = float(jnp.max(jnp.abs(out.astype(jnp.float32) - ref)))
    assert max_err < 3e-2, f"mismatch vs reference: max abs err {max_err}"

    print("KERNEL_OK")
</pallas_src>

<mosaic_0001>
module attributes {stable_mosaic.version = 11 : i64} {
  func.func @_image_proj_kernel(%arg0: i32, %arg1: memref<8x256xbf16, #tpu.memory_space<vmem>>, %arg2: memref<256x1024xbf16, #tpu.memory_space<vmem>>, %arg3: memref<1x1024xbf16, #tpu.memory_space<vmem>>, %arg4: memref<1x128xbf16, #tpu.memory_space<vmem>>, %arg5: memref<1x128xbf16, #tpu.memory_space<vmem>>, %arg6: memref<8x8x128xbf16, #tpu.memory_space<vmem>>) attributes {dimension_semantics = [#tpu.dimension_semantics<parallel>], iteration_bounds = array<i64: 2>, scalar_prefetch = 0 : i64, scratch_operands = 0 : i64, tpu.core_type = #tpu.core_type<tc>, window_params = [{pipeline_mode = #tpu.pipeline_mode<synchronous>, transform_indices = @transform_0, window_bounds = array<i64: 8, 256>}, {transform_indices = @transform_1, window_bounds = array<i64: 256, 1024>}, {transform_indices = @transform_2, window_bounds = array<i64: 1, 1024>}, {pipeline_mode = #tpu.pipeline_mode<synchronous>, transform_indices = @transform_3, window_bounds = array<i64: 1, 128>}, {pipeline_mode = #tpu.pipeline_mode<synchronous>, transform_indices = @transform_4, window_bounds = array<i64: 1, 128>}, {transform_indices = @transform_5, window_bounds = array<i64: 8, 8, 128>}]} {
    %c0 = arith.constant 0 : index
    %c0_0 = arith.constant 0 : index
    %0 = vector.load %arg1[%c0, %c0_0] : memref<8x256xbf16, #tpu.memory_space<vmem>>, vector<8x256xbf16>
    %c0_1 = arith.constant 0 : index
    %c0_2 = arith.constant 0 : index
    %1 = vector.load %arg2[%c0_1, %c0_2] : memref<256x1024xbf16, #tpu.memory_space<vmem>>, vector<256x1024xbf16>
    %cst = arith.constant dense<0.000000e+00> : vector<8x1024xf32>
    %2 = tpu.matmul %0, %1, %cst {dimension_numbers = #tpu.dot_dimension_numbers<[1], [0], [0], [1], [0, 0, 1, 1], [], []>} : vector<8x256xbf16>, vector<256x1024xbf16>, vector<8x1024xf32> -> vector<8x1024xf32>
    %c0_3 = arith.constant 0 : index
    %c0_4 = arith.constant 0 : index
    %3 = vector.load %arg3[%c0_3, %c0_4] : memref<1x1024xbf16, #tpu.memory_space<vmem>>, vector<1x1024xbf16>
    %4 = arith.extf %3 : vector<1x1024xbf16> to vector<1x1024xf32>
    %5 = vector.broadcast %4 : vector<1x1024xf32> to vector<8x1024xf32>
    %6 = arith.addf %2, %5 : vector<8x1024xf32>
    %c0_5 = arith.constant 0 : index
    %c0_6 = arith.constant 0 : index
    %7 = vector.load %arg4[%c0_5, %c0_6] : memref<1x128xbf16, #tpu.memory_space<vmem>>, vector<1x128xbf16>
    %8 = arith.extf %7 : vector<1x128xbf16> to vector<1x128xf32>
    %c0_7 = arith.constant 0 : index
    %c0_8 = arith.constant 0 : index
    %9 = vector.load %arg5[%c0_7, %c0_8] : memref<1x128xbf16, #tpu.memory_space<vmem>>, vector<1x128xbf16>
    %10 = arith.extf %9 : vector<1x128xbf16> to vector<1x128xf32>
    %11 = vector.extract_strided_slice %6 {offsets = [0, 0], sizes = [8, 128], strides = [1, 1]} : vector<8x1024xf32> to vector<8x128xf32>
    %cst_9 = arith.constant dense<0.000000e+00> : vector<8xf32>
    %12 = vector.multi_reduction <add>, %11, %cst_9 [1] : vector<8x128xf32> to vector<8xf32>
    %13 = vector.shape_cast %12 : vector<8xf32> to vector<8x1xf32>
    %cst_10 = arith.constant 1.280000e+02 : f32
    %14 = vector.broadcast %cst_10 : f32 to vector<8x1xf32>
    %15 = arith.divf %13, %14 : vector<8x1xf32>
    %16 = vector.broadcast %15 : vector<8x1xf32> to vector<8x128xf32>
    %17 = arith.subf %11, %16 : vector<8x128xf32>
    %18 = arith.mulf %17, %17 : vector<8x128xf32>
    %cst_11 = arith.constant dense<0.000000e+00> : vector<8xf32>
    %19 = vector.multi_reduction <add>, %18, %cst_11 [1] : vector<8x128xf32> to vector<8xf32>
    %20 = vector.shape_cast %19 : vector<8xf32> to vector<8x1xf32>
    %cst_12 = arith.constant 1.280000e+02 : f32
    %21 = vector.broadcast %cst_12 : f32 to vector<8x1xf32>
    %22 = arith.divf %20, %21 : vector<8x1xf32>
    %cst_13 = arith.constant 9.99999974E-6 : f32
    %23 = vector.broadcast %cst_13 : f32 to vector<8x1xf32>
    %24 = arith.addf %22, %23 : vector<8x1xf32>
    %25 = math.rsqrt %24 : vector<8x1xf32>
    %26 = vector.broadcast %25 : vector<8x1xf32> to vector<8x128xf32>
    %27 = arith.mulf %17, %26 : vector<8x128xf32>
    %28 = vector.broadcast %8 : vector<1x128xf32> to vector<8x128xf32>
    %29 = arith.mulf %27, %28 : vector<8x128xf32>
    %30 = vector.broadcast %10 : vector<1x128xf32> to vector<8x128xf32>
    %31 = arith.addf %29, %30 : vector<8x128xf32>
    %32 = arith.truncf %31 : vector<8x128xf32> to vector<8x128xbf16>
    %c0_14 = arith.constant 0 : index
    %c0_15 = arith.constant 0 : index
    %c0_16 = arith.constant 0 : index
    %33 = vector.load %arg6[%c0_14, %c0_15, %c0_16] : memref<8x8x128xbf16, #tpu.memory_space<vmem>>, vector<8x1x128xbf16>
    %34 = vector.shape_cast %33 : vector<8x1x128xbf16> to vector<8x128xbf16>
    %35 = vector.shape_cast %32 : vector<8x128xbf16> to vector<8x1x128xbf16>
    tpu.vector_store %arg6[%c0_14, %c0_15, %c0_16], %35 {strides = array<i32>} : memref<8x8x128xbf16, #tpu.memory_space<vmem>>, vector<8x1x128xbf16>,
    %36 = vector.extract_strided_slice %6 {offsets = [0, 128], sizes = [8, 128], strides = [1, 1]} : vector<8x1024xf32> to vector<8x128xf32>
    %cst_17 = arith.constant dense<0.000000e+00> : vector<8xf32>
    %37 = vector.multi_reduction <add>, %36, %cst_17 [1] : vector<8x128xf32> to vector<8xf32>
    %38 = vector.shape_cast %37 : vector<8xf32> to vector<8x1xf32>
    %cst_18 = arith.constant 1.280000e+02 : f32
    %39 = vector.broadcast %cst_18 : f32 to vector<8x1xf32>
    %40 = arith.divf %38, %39 : vector<8x1xf32>
    %41 = vector.broadcast %40 : vector<8x1xf32> to vector<8x128xf32>
    %42 = arith.subf %36, %41 : vector<8x128xf32>
    %43 = arith.mulf %42, %42 : vector<8x128xf32>
    %cst_19 = arith.constant dense<0.000000e+00> : vector<8xf32>
    %44 = vector.multi_reduction <add>, %43, %cst_19 [1] : vector<8x128xf32> to vector<8xf32>
    %45 = vector.shape_cast %44 : vector<8xf32> to vector<8x1xf32>
    %cst_20 = arith.constant 1.280000e+02 : f32
    %46 = vector.broadcast %cst_20 : f32 to vector<8x1xf32>
    %47 = arith.divf %45, %46 : vector<8x1xf32>
    %cst_21 = arith.constant 9.99999974E-6 : f32
    %48 = vector.broadcast %cst_21 : f32 to vector<8x1xf32>
    %49 = arith.addf %47, %48 : vector<8x1xf32>
    %50 = math.rsqrt %49 : vector<8x1xf32>
    %51 = vector.broadcast %50 : vector<8x1xf32> to vector<8x128xf32>
    %52 = arith.mulf %42, %51 : vector<8x128xf32>
    %53 = vector.broadcast %8 : vector<1x128xf32> to vector<8x128xf32>
    %54 = arith.mulf %52, %53 : vector<8x128xf32>
    %55 = vector.broadcast %10 : vector<1x128xf32> to vector<8x128xf32>
    %56 = arith.addf %54, %55 : vector<8x128xf32>
    %57 = arith.truncf %56 : vector<8x128xf32> to vector<8x128xbf16>
    %c0_22 = arith.constant 0 : index
    %c1 = arith.constant 1 : index
    %c0_23 = arith.constant 0 : index
    %58 = vector.load %arg6[%c0_22, %c1, %c0_23] : memref<8x8x128xbf16, #tpu.memory_space<vmem>>, vector<8x1x128xbf16>
    %59 = vector.shape_cast %58 : vector<8x1x128xbf16> to vector<8x128xbf16>
    %60 = vector.shape_cast %57 : vector<8x128xbf16> to vector<8x1x128xbf16>
    tpu.vector_store %arg6[%c0_22, %c1, %c0_23], %60 {strides = array<i32>} : memref<8x8x128xbf16, #tpu.memory_space<vmem>>, vector<8x1x128xbf16>,
    %61 = vector.extract_strided_slice %6 {offsets = [0, 256], sizes = [8, 128], strides = [1, 1]} : vector<8x1024xf32> to vector<8x128xf32>
    %cst_24 = arith.constant dense<0.000000e+00> : vector<8xf32>
    %62 = vector.multi_reduction <add>, %61, %cst_24 [1] : vector<8x128xf32> to vector<8xf32>
    %63 = vector.shape_cast %62 : vector<8xf32> to vector<8x1xf32>
    %cst_25 = arith.constant 1.280000e+02 : f32
    %64 = vector.broadcast %cst_25 : f32 to vector<8x1xf32>
    %65 = arith.divf %63, %64 : vector<8x1xf32>
    %66 = vector.broadcast %65 : vector<8x1xf32> to vector<8x128xf32>
    %67 = arith.subf %61, %66 : vector<8x128xf32>
    %68 = arith.mulf %67, %67 : vector<8x128xf32>
    %cst_26 = arith.constant dense<0.000000e+00> : vector<8xf32>
    %69 = vector.multi_reduction <add>, %68, %cst_26 [1] : vector<8x128xf32> to vector<8xf32>
    %70 = vector.shape_cast %69 : vector<8xf32> to vector<8x1xf32>
    %cst_27 = arith.constant 1.280000e+02 : f32
    %71 = vector.broadcast %cst_27 : f32 to vector<8x1xf32>
    %72 = arith.divf %70, %71 : vector<8x1xf32>
    %cst_28 = arith.constant 9.99999974E-6 : f32
    %73 = vector.broadcast %cst_28 : f32 to vector<8x1xf32>
    %74 = arith.addf %72, %73 : vector<8x1xf32>
    %75 = math.rsqrt %74 : vector<8x1xf32>
    %76 = vector.broadcast %75 : vector<8x1xf32> to vector<8x128xf32>
    %77 = arith.mulf %67, %76 : vector<8x128xf32>
    %78 = vector.broadcast %8 : vector<1x128xf32> to vector<8x128xf32>
    %79 = arith.mulf %77, %78 : vector<8x128xf32>
    %80 = vector.broadcast %10 : vector<1x128xf32> to vector<8x128xf32>
    %81 = arith.addf %79, %80 : vector<8x128xf32>
    %82 = arith.truncf %81 : vector<8x128xf32> to vector<8x128xbf16>
    %c0_29 = arith.constant 0 : index
    %c2 = arith.constant 2 : index
    %c0_30 = arith.constant 0 : index
    %83 = vector.load %arg6[%c0_29, %c2, %c0_30] : memref<8x8x128xbf16, #tpu.memory_space<vmem>>, vector<8x1x128xbf16>
    %84 = vector.shape_cast %83 : vector<8x1x128xbf16> to vector<8x128xbf16>
    %85 = vector.shape_cast %82 : vector<8x128xbf16> to vector<8x1x128xbf16>
    tpu.vector_store %arg6[%c0_29, %c2, %c0_30], %85 {strides = array<i32>} : memref<8x8x128xbf16, #tpu.memory_space<vmem>>, vector<8x1x128xbf16>,
    %86 = vector.extract_strided_slice %6 {offsets = [0, 384], sizes = [8, 128], strides = [1, 1]} : vector<8x1024xf32> to vector<8x128xf32>
    %cst_31 = arith.constant dense<0.000000e+00> : vector<8xf32>
    %87 = vector.multi_reduction <add>, %86, %cst_31 [1] : vector<8x128xf32> to vector<8xf32>
    %88 = vector.shape_cast %87 : vector<8xf32> to vector<8x1xf32>
    %cst_32 = arith.constant 1.280000e+02 : f32
    %89 = vector.broadcast %cst_32 : f32 to vector<8x1xf32>
    %90 = arith.divf %88, %89 : vector<8x1xf32>
    %91 = vector.broadcast %90 : vector<8x1xf32> to vector<8x128xf32>
    %92 = arith.subf %86, %91 : vector<8x128xf32>
    %93 = arith.mulf %92, %92 : vector<8x128xf32>
    %cst_33 = arith.constant dense<0.000000e+00> : vector<8xf32>
    %94 = vector.multi_reduction <add>, %93, %cst_33 [1] : vector<8x128xf32> to vector<8xf32>
    %95 = vector.shape_cast %94 : vector<8xf32> to vector<8x1xf32>
    %cst_34 = arith.constant 1.280000e+02 : f32
    %96 = vector.broadcast %cst_34 : f32 to vector<8x1xf32>
    %97 = arith.divf %95, %96 : vector<8x1xf32>
    %cst_35 = arith.constant 9.99999974E-6 : f32
    %98 = vector.broadcast %cst_35 : f32 to vector<8x1xf32>
    %99 = arith.addf %97, %98 : vector<8x1xf32>
    %100 = math.rsqrt %99 : vector<8x1xf32>
    %101 = vector.broadcast %100 : vector<8x1xf32> to vector<8x128xf32>
    %102 = arith.mulf %92, %101 : vector<8x128xf32>
    %103 = vector.broadcast %8 : vector<1x128xf32> to vector<8x128xf32>
    %104 = arith.mulf %102, %103 : vector<8x128xf32>
    %105 = vector.broadcast %10 : vector<1x128xf32> to vector<8x128xf32>
    %106 = arith.addf %104, %105 : vector<8x128xf32>
    %107 = arith.truncf %106 : vector<8x128xf32> to vector<8x128xbf16>
    %c0_36 = arith.constant 0 : index
    %c3 = arith.constant 3 : index
    %c0_37 = arith.constant 0 : index
    %108 = vector.load %arg6[%c0_36, %c3, %c0_37] : memref<8x8x128xbf16, #tpu.memory_space<vmem>>, vector<8x1x128xbf16>
    %109 = vector.shape_cast %108 : vector<8x1x128xbf16> to vector<8x128xbf16>
    %110 = vector.shape_cast %107 : vector<8x128xbf16> to vector<8x1x128xbf16>
    tpu.vector_store %arg6[%c0_36, %c3, %c0_37], %110 {strides = array<i32>} : memref<8x8x128xbf16, #tpu.memory_space<vmem>>, vector<8x1x128xbf16>,
    %111 = vector.extract_strided_slice %6 {offsets = [0, 512], sizes = [8, 128], strides = [1, 1]} : vector<8x1024xf32> to vector<8x128xf32>
    %cst_38 = arith.constant dense<0.000000e+00> : vector<8xf32>
    %112 = vector.multi_reduction <add>, %111, %cst_38 [1] : vector<8x128xf32> to vector<8xf32>
    %113 = vector.shape_cast %112 : vector<8xf32> to vector<8x1xf32>
    %cst_39 = arith.constant 1.280000e+02 : f32
    %114 = vector.broadcast %cst_39 : f32 to vector<8x1xf32>
    %115 = arith.divf %113, %114 : vector<8x1xf32>
    %116 = vector.broadcast %115 : vector<8x1xf32> to vector<8x128xf32>
    %117 = arith.subf %111, %116 : vector<8x128xf32>
    %118 = arith.mulf %117, %117 : vector<8x128xf32>
    %cst_40 = arith.constant dense<0.000000e+00> : vector<8xf32>
    %119 = vector.multi_reduction <add>, %118, %cst_40 [1] : vector<8x128xf32> to vector<8xf32>
    %120 = vector.shape_cast %119 : vector<8xf32> to vector<8x1xf32>
    %cst_41 = arith.constant 1.280000e+02 : f32
    %121 = vector.broadcast %cst_41 : f32 to vector<8x1xf32>
    %122 = arith.divf %120, %121 : vector<8x1xf32>
    %cst_42 = arith.constant 9.99999974E-6 : f32
    %123 = vector.broadcast %cst_42 : f32 to vector<8x1xf32>
    %124 = arith.addf %122, %123 : vector<8x1xf32>
    %125 = math.rsqrt %124 : vector<8x1xf32>
    %126 = vector.broadcast %125 : vector<8x1xf32> to vector<8x128xf32>
    %127 = arith.mulf %117, %126 : vector<8x128xf32>
    %128 = vector.broadcast %8 : vector<1x128xf32> to vector<8x128xf32>
    %129 = arith.mulf %127, %128 : vector<8x128xf32>
    %130 = vector.broadcast %10 : vector<1x128xf32> to vector<8x128xf32>
    %131 = arith.addf %129, %130 : vector<8x128xf32>
    %132 = arith.truncf %131 : vector<8x128xf32> to vector<8x128xbf16>
    %c0_43 = arith.constant 0 : index
    %c4 = arith.constant 4 : index
    %c0_44 = arith.constant 0 : index
    %133 = vector.load %arg6[%c0_43, %c4, %c0_44] : memref<8x8x128xbf16, #tpu.memory_space<vmem>>, vector<8x1x128xbf16>
    %134 = vector.shape_cast %133 : vector<8x1x128xbf16> to vector<8x128xbf16>
    %135 = vector.shape_cast %132 : vector<8x128xbf16> to vector<8x1x128xbf16>
    tpu.vector_store %arg6[%c0_43, %c4, %c0_44], %135 {strides = array<i32>} : memref<8x8x128xbf16, #tpu.memory_space<vmem>>, vector<8x1x128xbf16>,
    %136 = vector.extract_strided_slice %6 {offsets = [0, 640], sizes = [8, 128], strides = [1, 1]} : vector<8x1024xf32> to vector<8x128xf32>
    %cst_45 = arith.constant dense<0.000000e+00> : vector<8xf32>
    %137 = vector.multi_reduction <add>, %136, %cst_45 [1] : vector<8x128xf32> to vector<8xf32>
    %138 = vector.shape_cast %137 : vector<8xf32> to vector<8x1xf32>
    %cst_46 = arith.constant 1.280000e+02 : f32
    %139 = vector.broadcast %cst_46 : f32 to vector<8x1xf32>
    %140 = arith.divf %138, %139 : vector<8x1xf32>
    %141 = vector.broadcast %140 : vector<8x1xf32> to vector<8x128xf32>
    %142 = arith.subf %136, %141 : vector<8x128xf32>
    %143 = arith.mulf %142, %142 : vector<8x128xf32>
    %cst_47 = arith.constant dense<0.000000e+00> : vector<8xf32>
    %144 = vector.multi_reduction <add>, %143, %cst_47 [1] : vector<8x128xf32> to vector<8xf32>
    %145 = vector.shape_cast %144 : vector<8xf32> to vector<8x1xf32>
    %cst_48 = arith.constant 1.280000e+02 : f32
    %146 = vector.broadcast %cst_48 : f32 to vector<8x1xf32>
    %147 = arith.divf %145, %146 : vector<8x1xf32>
    %cst_49 = arith.constant 9.99999974E-6 : f32
    %148 = vector.broadcast %cst_49 : f32 to vector<8x1xf32>
    %149 = arith.addf %147, %148 : vector<8x1xf32>
    %150 = math.rsqrt %149 : vector<8x1xf32>
    %151 = vector.broadcast %150 : vector<8x1xf32> to vector<8x128xf32>
    %152 = arith.mulf %142, %151 : vector<8x128xf32>
    %153 = vector.broadcast %8 : vector<1x128xf32> to vector<8x128xf32>
    %154 = arith.mulf %152, %153 : vector<8x128xf32>
    %155 = vector.broadcast %10 : vector<1x128xf32> to vector<8x128xf32>
    %156 = arith.addf %154, %155 : vector<8x128xf32>
    %157 = arith.truncf %156 : vector<8x128xf32> to vector<8x128xbf16>
    %c0_50 = arith.constant 0 : index
    %c5 = arith.constant 5 : index
    %c0_51 = arith.constant 0 : index
    %158 = vector.load %arg6[%c0_50, %c5, %c0_51] : memref<8x8x128xbf16, #tpu.memory_space<vmem>>, vector<8x1x128xbf16>
    %159 = vector.shape_cast %158 : vector<8x1x128xbf16> to vector<8x128xbf16>
    %160 = vector.shape_cast %157 : vector<8x128xbf16> to vector<8x1x128xbf16>
    tpu.vector_store %arg6[%c0_50, %c5, %c0_51], %160 {strides = array<i32>} : memref<8x8x128xbf16, #tpu.memory_space<vmem>>, vector<8x1x128xbf16>,
    %161 = vector.extract_strided_slice %6 {offsets = [0, 768], sizes = [8, 128], strides = [1, 1]} : vector<8x1024xf32> to vector<8x128xf32>
    %cst_52 = arith.constant dense<0.000000e+00> : vector<8xf32>
    %162 = vector.multi_reduction <add>, %161, %cst_52 [1] : vector<8x128xf32> to vector<8xf32>
    %163 = vector.shape_cast %162 : vector<8xf32> to vector<8x1xf32>
    %cst_53 = arith.constant 1.280000e+02 : f32
    %164 = vector.broadcast %cst_53 : f32 to vector<8x1xf32>
    %165 = arith.divf %163, %164 : vector<8x1xf32>
    %166 = vector.broadcast %165 : vector<8x1xf32> to vector<8x128xf32>
    %167 = arith.subf %161, %166 : vector<8x128xf32>
    %168 = arith.mulf %167, %167 : vector<8x128xf32>
    %cst_54 = arith.constant dense<0.000000e+00> : vector<8xf32>
    %169 = vector.multi_reduction <add>, %168, %cst_54 [1] : vector<8x128xf32> to vector<8xf32>
    %170 = vector.shape_cast %169 : vector<8xf32> to vector<8x1xf32>
    %cst_55 = arith.constant 1.280000e+02 : f32
    %171 = vector.broadcast %cst_55 : f32 to vector<8x1xf32>
    %172 = arith.divf %170, %171 : vector<8x1xf32>
    %cst_56 = arith.constant 9.99999974E-6 : f32
    %173 = vector.broadcast %cst_56 : f32 to vector<8x1xf32>
    %174 = arith.addf %172, %173 : vector<8x1xf32>
    %175 = math.rsqrt %174 : vector<8x1xf32>
    %176 = vector.broadcast %175 : vector<8x1xf32> to vector<8x128xf32>
    %177 = arith.mulf %167, %176 : vector<8x128xf32>
    %178 = vector.broadcast %8 : vector<1x128xf32> to vector<8x128xf32>
    %179 = arith.mulf %177, %178 : vector<8x128xf32>
    %180 = vector.broadcast %10 : vector<1x128xf32> to vector<8x128xf32>
    %181 = arith.addf %179, %180 : vector<8x128xf32>
    %182 = arith.truncf %181 : vector<8x128xf32> to vector<8x128xbf16>
    %c0_57 = arith.constant 0 : index
    %c6 = arith.constant 6 : index
    %c0_58 = arith.constant 0 : index
    %183 = vector.load %arg6[%c0_57, %c6, %c0_58] : memref<8x8x128xbf16, #tpu.memory_space<vmem>>, vector<8x1x128xbf16>
    %184 = vector.shape_cast %183 : vector<8x1x128xbf16> to vector<8x128xbf16>
    %185 = vector.shape_cast %182 : vector<8x128xbf16> to vector<8x1x128xbf16>
    tpu.vector_store %arg6[%c0_57, %c6, %c0_58], %185 {strides = array<i32>} : memref<8x8x128xbf16, #tpu.memory_space<vmem>>, vector<8x1x128xbf16>,
    %186 = vector.extract_strided_slice %6 {offsets = [0, 896], sizes = [8, 128], strides = [1, 1]} : vector<8x1024xf32> to vector<8x128xf32>
    %cst_59 = arith.constant dense<0.000000e+00> : vector<8xf32>
    %187 = vector.multi_reduction <add>, %186, %cst_59 [1] : vector<8x128xf32> to vector<8xf32>
    %188 = vector.shape_cast %187 : vector<8xf32> to vector<8x1xf32>
    %cst_60 = arith.constant 1.280000e+02 : f32
    %189 = vector.broadcast %cst_60 : f32 to vector<8x1xf32>
    %190 = arith.divf %188, %189 : vector<8x1xf32>
    %191 = vector.broadcast %190 : vector<8x1xf32> to vector<8x128xf32>
    %192 = arith.subf %186, %191 : vector<8x128xf32>
    %193 = arith.mulf %192, %192 : vector<8x128xf32>
    %cst_61 = arith.constant dense<0.000000e+00> : vector<8xf32>
    %194 = vector.multi_reduction <add>, %193, %cst_61 [1] : vector<8x128xf32> to vector<8xf32>
    %195 = vector.shape_cast %194 : vector<8xf32> to vector<8x1xf32>
    %cst_62 = arith.constant 1.280000e+02 : f32
    %196 = vector.broadcast %cst_62 : f32 to vector<8x1xf32>
    %197 = arith.divf %195, %196 : vector<8x1xf32>
    %cst_63 = arith.constant 9.99999974E-6 : f32
    %198 = vector.broadcast %cst_63 : f32 to vector<8x1xf32>
    %199 = arith.addf %197, %198 : vector<8x1xf32>
    %200 = math.rsqrt %199 : vector<8x1xf32>
    %201 = vector.broadcast %200 : vector<8x1xf32> to vector<8x128xf32>
    %202 = arith.mulf %192, %201 : vector<8x128xf32>
    %203 = vector.broadcast %8 : vector<1x128xf32> to vector<8x128xf32>
    %204 = arith.mulf %202, %203 : vector<8x128xf32>
    %205 = vector.broadcast %10 : vector<1x128xf32> to vector<8x128xf32>
    %206 = arith.addf %204, %205 : vector<8x128xf32>
    %207 = arith.truncf %206 : vector<8x128xf32> to vector<8x128xbf16>
    %c0_64 = arith.constant 0 : index
    %c7 = arith.constant 7 : index
    %c0_65 = arith.constant 0 : index
    %208 = vector.load %arg6[%c0_64, %c7, %c0_65] : memref<8x8x128xbf16, #tpu.memory_space<vmem>>, vector<8x1x128xbf16>
    %209 = vector.shape_cast %208 : vector<8x1x128xbf16> to vector<8x128xbf16>
    %210 = vector.shape_cast %207 : vector<8x128xbf16> to vector<8x1x128xbf16>
    tpu.vector_store %arg6[%c0_64, %c7, %c0_65], %210 {strides = array<i32>} : memref<8x8x128xbf16, #tpu.memory_space<vmem>>, vector<8x1x128xbf16>,
    return
  }
  func.func @transform_0(%arg0: i32) -> (i32, i32) {
    %c0_i32 = arith.constant 0 : i32
    %c0_i32_0 = arith.constant 0 : i32
    %c0_i32_1 = arith.constant 0 : i32
    return %c0_i32, %c0_i32_0 : i32, i32
  }
  func.func @transform_1(%arg0: i32) -> (i32, i32) {
    %c0_i32 = arith.constant 0 : i32
    %c0_i32_0 = arith.constant 0 : i32
    return %c0_i32, %arg0 : i32, i32
  }
  func.func @transform_2(%arg0: i32) -> (i32, i32) {
    %c0_i32 = arith.constant 0 : i32
    %c0_i32_0 = arith.constant 0 : i32
    return %c0_i32, %arg0 : i32, i32
  }
  func.func @transform_3(%arg0: i32) -> (i32, i32) {
    %c0_i32 = arith.constant 0 : i32
    %c0_i32_0 = arith.constant 0 : i32
    %c0_i32_1 = arith.constant 0 : i32
    return %c0_i32, %c0_i32_0 : i32, i32
  }
  func.func @transform_4(%arg0: i32) -> (i32, i32) {
    %c0_i32 = arith.constant 0 : i32
    %c0_i32_0 = arith.constant 0 : i32
    %c0_i32_1 = arith.constant 0 : i32
    return %c0_i32, %c0_i32_0 : i32, i32
  }
  func.func @transform_5(%arg0: i32) -> (i32, i32, i32) {
    %c0_i32 = arith.constant 0 : i32
    %c0_i32_0 = arith.constant 0 : i32
    %c0_i32_1 = arith.constant 0 : i32
    return %c0_i32, %arg0, %c0_i32_0 : i32, i32, i32
  }
}

</mosaic_0001>

<llo_original>
// kernel: tpu_custom_call.1
$region0: #{tpu_custom_call.1}
  #allocation0 [shape = 'u32[]', space=smem, size = 0x4, offset = 0x4, fixed_abs, tag = 'smem constant byte address 0x4 - core index']
  #allocation1 [shape = 'u32[144,128]{1,0:T(1,128)}', space=vmem, size = 0x12000, scoped, tag = 'internal scratch']
  %s0 = inlined_call_operand.hbm [shape: bf16[8,256], index: 0, kind: input, shape index: {}]
  %s1 = inlined_call_operand.hbm [shape: bf16[256,2048], index: 1, kind: input, shape index: {}]
  %s2 = inlined_call_operand.hbm [shape: bf16[1,2048], index: 2, kind: input, shape index: {}]
  %s3 = inlined_call_operand.vmem [shape: bf16[1,128], index: 3, kind: input, shape index: {}]
  %s4 = inlined_call_operand.vmem [shape: bf16[1,128], index: 4, kind: input, shape index: {}]
  %s5 = inlined_call_operand.hbm [shape: bf16[8,16,128], index: 5, kind: output, shape index: {}]
  %s6 = sld [smem:[#allocation0]]
  $region65: #{tpu_custom_call.1} parent=0
    _
  %s8 = ssub.s32 1, %s6
  %s9 = scalar_select 0, %s8, %s6
  $region1: #{tpu_custom_call.1} parent=0
    #allocation2 [shape = 'u8[4096]{0}', space=vmem, size = 0x1000, scoped, tag = 'input window, operand 0, single buffered']
    #allocation3 [shape = 's32[2]{0}', space=sflag, size = 0x8, scoped, tag = 'scoped memory for tpu_custom_call.1']
    #allocation4 [shape = 's32[2]{0}', space=sflag, size = 0x8, scoped, tag = 'scoped memory for tpu_custom_call.1']
    #allocation5 [shape = 'u8[1048576]{0}', space=vmem, size = 0x100000, scoped, tag = 'input window, operand 1']
    #allocation6 [shape = 's32[2]{0}', space=sflag, size = 0x8, scoped, tag = 'scoped memory for tpu_custom_call.1']
    #allocation7 [shape = 'u8[8192]{0}', space=vmem, size = 0x2000, scoped, tag = 'input window, operand 2']
    #allocation8 [shape = 'u8[32768]{0}', space=vmem, size = 0x8000, scoped, tag = 'output window, operand 0']
    %10 = vsyncpa [#allocation3], 0
    %11 = vsyncpa [#allocation6], 0
    %s12 = scalar_lea.sflag [#allocation6], 1
    %13 = vsyncpa %s12, 0
    %14 = vsyncpa [#allocation4], 0
    %s15 = scalar_lea.sflag [#allocation4], 1
    %16 = vsyncpa %s15, 0
    loop: start=0, step=1, limit=4
    $region2: #{tpu_custom_call.1} parent=1 // loop_pre_header
      _
    $region3: #{tpu_custom_call.1} parent=1 // loop_header
      %s18 = sphi 0, %s22
      %p19 = scmp.ge.s32.totalorder %s18, 4
      %s26 = sphi 0, %s26
      %s28 = sphi 0, %s26
      %s29 = sphi 0, %s28
      %s43 = sphi 0, %s29
      %s49 = sphi 0, %s51
      %s52 = sphi 0, %s49
      %s53 = sphi 0, %s52
      %s69 = sphi 0, %s53
      %s75 = sphi 0, %s77
      %s78 = sphi 0, %s75
      %s79 = sphi 0, %s78
      %s95 = sphi 0, %s79
      %s99 = sphi 0, %s99
      %s101 = sphi 0, %s99
      %s102 = sphi 0, %s101
      %s116 = sphi 0, %s102
      %s120 = sphi 0, %s120
      %s122 = sphi 0, %s120
      %s123 = sphi 0, %s122
      %s137 = sphi 0, %s123
      %s143 = sphi 0, %s145
      %s146 = sphi 0, %s143
      %s147 = sphi 0, %s146
      %s163 = sphi 0, %s147
    $region4: #{tpu_custom_call.1} parent=1 // loop_header_branch
      %21 = sbr.rel (%p19) target = $region8
    $region5: #{tpu_custom_call.1} parent=1 // loop_body
      %s23 = ssub.s32 %s18, 1
      %s24 = ssub.s32 %s18, 2
      %s25 = sadd.s32 %s18, 1
      %s27 = sadd.s32 %s26, 1
      %p30 = scmp.eq.s32.totalorder %s18, 1
      %p31 = scmp.ne.s32.totalorder %s26, %s28
      %p32 = scmp.eq.s32.totalorder %s18, 0
      %p33 = por %p31, %p32
      %p34 = scmp.ne.s32.totalorder %s26, %s28
      %p35 = scmp.eq.s32.totalorder %s23, 1
      %p36 = por %p34, %p35
      %p37 = scmp.ne.s32.totalorder %s28, %s29
      %p38 = scmp.eq.s32.totalorder %s23, 0
      %p39 = por %p37, %p38
      %p40 = scmp.ne.s32.totalorder %s28, %s29
      %p41 = scmp.eq.s32.totalorder %s24, 1
      %p42 = por %p40, %p41
      %p44 = scmp.ne.s32.totalorder %s29, %s43
      %p45 = scmp.eq.s32.totalorder %s24, 0
      %p46 = por %p44, %p45
      %s47 = ssub.s32 %s18, %s25
      %p48 = scmp.eq.s32.totalorder %s47, 0
      %s50 = sadd.s32 %s49, 1
      %s51 = scalar_select %p48, %s49, %s50
      %p54 = pneg %p48
      %p55 = scmp.eq.s32.totalorder %s18, 1
      %p56 = por %p54, %p55
      %p57 = scmp.ne.s32.totalorder %s49, %s52
      %p58 = scmp.eq.s32.totalorder %s18, 0
      %p59 = por %p57, %p58
      %p60 = scmp.ne.s32.totalorder %s49, %s52
      %p61 = scmp.eq.s32.totalorder %s23, 1
      %p62 = por %p60, %p61
      %p63 = scmp.ne.s32.totalorder %s52, %s53
      %p64 = scmp.eq.s32.totalorder %s23, 0
      %p65 = por %p63, %p64
      %p66 = scmp.ne.s32.totalorder %s52, %s53
      %p67 = scmp.eq.s32.totalorder %s24, 1
      %p68 = por %p66, %p67
      %p70 = scmp.ne.s32.totalorder %s53, %s69
      %p71 = scmp.eq.s32.totalorder %s24, 0
      %p72 = por %p70, %p71
      %s73 = ssub.s32 %s18, %s25
      %p74 = scmp.eq.s32.totalorder %s73, 0
      %s76 = sadd.s32 %s75, 1
      %s77 = scalar_select %p74, %s75, %s76
      %p80 = pneg %p74
      %p81 = scmp.eq.s32.totalorder %s18, 1
      %p82 = por %p80, %p81
      %p83 = scmp.ne.s32.totalorder %s75, %s78
      %p84 = scmp.eq.s32.totalorder %s18, 0
      %p85 = por %p83, %p84
      %p86 = scmp.ne.s32.totalorder %s75, %s78
      %p87 = scmp.eq.s32.totalorder %s23, 1
      %p88 = por %p86, %p87
      %p89 = scmp.ne.s32.totalorder %s78, %s79
      %p90 = scmp.eq.s32.totalorder %s23, 0
      %p91 = por %p89, %p90
      %p92 = scmp.ne.s32.totalorder %s78, %s79
      %p93 = scmp.eq.s32.totalorder %s24, 1
      %p94 = por %p92, %p93
      %p96 = scmp.ne.s32.totalorder %s79, %s95
      %p97 = scmp.eq.s32.totalorder %s24, 0
      %p98 = por %p96, %p97
      %s100 = sadd.s32 %s99, 1
      %p103 = scmp.eq.s32.totalorder %s18, 1
      %p104 = scmp.ne.s32.totalorder %s99, %s101
      %p105 = scmp.eq.s32.totalorder %s18, 0
      %p106 = por %p104, %p105
      %p107 = scmp.ne.s32.totalorder %s99, %s101
      %p108 = scmp.eq.s32.totalorder %s23, 1
      %p109 = por %p107, %p108
      %p110 = scmp.ne.s32.totalorder %s101, %s102
      %p111 = scmp.eq.s32.totalorder %s23, 0
      %p112 = por %p110, %p111
      %p113 = scmp.ne.s32.totalorder %s101, %s102
      %p114 = scmp.eq.s32.totalorder %s24, 1
      %p115 = por %p113, %p114
      %p117 = scmp.ne.s32.totalorder %s102, %s116
      %p118 = scmp.eq.s32.totalorder %s24, 0
      %p119 = por %p117, %p118
      %s121 = sadd.s32 %s120, 1
      %p124 = scmp.eq.s32.totalorder %s18, 1
      %p125 = scmp.ne.s32.totalorder %s120, %s122
      %p126 = scmp.eq.s32.totalorder %s18, 0
      %p127 = por %p125, %p126
      %p128 = scmp.ne.s32.totalorder %s120, %s122
      %p129 = scmp.eq.s32.totalorder %s23, 1
      %p130 = por %p128, %p129
      %p131 = scmp.ne.s32.totalorder %s122, %s123
      %p132 = scmp.eq.s32.totalorder %s23, 0
      %p133 = por %p131, %p132
      %p134 = scmp.ne.s32.totalorder %s122, %s123
      %p135 = scmp.eq.s32.totalorder %s24, 1
      %p136 = por %p134, %p135
      %p138 = scmp.ne.s32.totalorder %s123, %s137
      %p139 = scmp.eq.s32.totalorder %s24, 0
      %p140 = por %p138, %p139
      %s141 = ssub.s32 %s18, %s25
      %p142 = scmp.eq.s32.totalorder %s141, 0
      %s144 = sadd.s32 %s143, 1
      %s145 = scalar_select %p142, %s143, %s144
      %p148 = pneg %p142
      %p149 = scmp.eq.s32.totalorder %s18, 1
      %p150 = por %p148, %p149
      %p151 = scmp.ne.s32.totalorder %s143, %s146
      %p152 = scmp.eq.s32.totalorder %s18, 0
      %p153 = por %p151, %p152
      %p154 = scmp.ne.s32.totalorder %s143, %s146
      %p155 = scmp.eq.s32.totalorder %s23, 1
      %p156 = por %p154, %p155
      %p157 = scmp.ne.s32.totalorder %s146, %s147
      %p158 = scmp.eq.s32.totalorder %s23, 0
      %p159 = por %p157, %p158
      %p160 = scmp.ne.s32.totalorder %s146, %s147
      %p161 = scmp.eq.s32.totalorder %s24, 1
      %p162 = por %p160, %p161
      %p164 = scmp.ne.s32.totalorder %s147, %s163
      %p165 = scmp.eq.s32.totalorder %s24, 0
      %p166 = por %p164, %p165
      %p167 = scmp.le.s32.totalorder 1, %s18
      %p168 = scmp.lt.s32.totalorder %s18, 3
      %p169 = pnand %p167, %p168
      %p170 = pneg %p169
      // Predicated region
      $region9: #{tpu_custom_call.1} parent=5 // pred_check
        _
      $region10: #{tpu_custom_call.1} parent=5 // pred_check_branch
        %172 = sbr.rel (%p169) target = $region12
      $region11: #{tpu_custom_call.1} parent=5 // pred_region
        %s173 = ssub.s32 %s18, 1
        // Predicated region
        $region13: #{tpu_custom_call.1} parent=11 // pred_check
          %p174 = pneg %p39
        $region14: #{tpu_custom_call.1} parent=11 // pred_check_branch
          %176 = sbr.rel (%p174) target = $region16
        $region15: #{tpu_custom_call.1} parent=11 // pred_region
          %s178 = ssub.s32 128, 128
          %179 = vsyncadd [#allocation3], %s178
          %s181 = sshll.u32 [#allocation2], 4
          %s182 = int_to_ptr.vmem [resolvable:$true] %s181
          %184 = dma.hbm_to_vmem [thread:$0]  %s0, 128, %s182, [#allocation3]
        $region16: #{tpu_custom_call.1} parent=11 // pred_fallthru
          _
        // Predicated region
        $region17: #{tpu_custom_call.1} parent=11 // pred_check
          %p185 = pneg %p112
        $region18: #{tpu_custom_call.1} parent=11 // pred_check_branch
          %187 = sbr.rel (%p185) target = $region20
        $region19: #{tpu_custom_call.1} parent=11 // pred_region
          _
        $region20: #{tpu_custom_call.1} parent=11 // pred_fallthru
          _
        // Predicated region
        $region21: #{tpu_custom_call.1} parent=11 // pred_check
          %p188 = pneg %p133
        $region22: #{tpu_custom_call.1} parent=11 // pred_check_branch
          %190 = sbr.rel (%p188) target = $region24
        $region23: #{tpu_custom_call.1} parent=11 // pred_region
          _
        $region24: #{tpu_custom_call.1} parent=11 // pred_fallthru
          _
      $region12: #{tpu_custom_call.1} parent=5 // pred_fallthru
        _
      %p191 = scmp.lt.s32.totalorder %s18, 2
      // Predicated region
      $region25: #{tpu_custom_call.1} parent=5 // pred_check
        %p192 = pneg %p191
      $region26: #{tpu_custom_call.1} parent=5 // pred_check_branch
        %194 = sbr.rel (%p192) target = $region28
      $region27: #{tpu_custom_call.1} parent=5 // pred_region
        // Predicated region
        $region29: #{tpu_custom_call.1} parent=27 // pred_check
          %p195 = pneg %p59
        $region30: #{tpu_custom_call.1} parent=27 // pred_check_branch
          %197 = sbr.rel (%p195) target = $region32
        $region31: #{tpu_custom_call.1} parent=27 // pred_region
          %s198 = sand.u32 %s18, 1
          %s199 = scalar_lea.sflag [#allocation6], %s198
          %s200 = sand.u32 %s49, 1
          %s201 = smul.addr %s200, 1024
          %s202 = scalar_lea.vmem [#allocation5], %s201
          %s203 = smul.u32 8, %s18
          %s205 = ssub.s32 16384, 16384
          %206 = vsyncadd %s199, %s205
          %s207 = smul.addr %s203, 64
          %s208 = scalar_lea.hbm %s1, %s207
          %s209 = sshll.u32 %s202, 4
          %s210 = int_to_ptr.vmem [resolvable:$true] %s209
          %215 = dma.hbm_to_vmem [thread:$0]  %s208, 16384, %s210, %s199, 1024, 512, 32
        $region32: #{tpu_custom_call.1} parent=27 // pred_fallthru
          _
        // Predicated region
        $region33: #{tpu_custom_call.1} parent=27 // pred_check
          %p216 = pneg %p85
        $region34: #{tpu_custom_call.1} parent=27 // pred_check_branch
          %218 = sbr.rel (%p216) target = $region36
        $region35: #{tpu_custom_call.1} parent=27 // pred_region
          %s219 = sand.u32 %s18, 1
          %s220 = scalar_lea.sflag [#allocation6], %s219
          %s221 = sand.u32 %s75, 1
          %s222 = smul.addr %s221, 8
          %s223 = scalar_lea.vmem [#allocation7], %s222
          %s224 = smul.u32 8, %s18
          %s226 = ssub.s32 128, 128
          %227 = vsyncadd %s220, %s226
          %s228 = smul.addr %s224, 16
          %s229 = scalar_lea.hbm %s2, %s228
          %s231 = sshll.u32 %s223, 4
          %s232 = int_to_ptr.vmem [resolvable:$true] %s231
          %234 = dma.hbm_to_vmem [thread:$0]  %s229, 128, %s232, %s220
        $region36: #{tpu_custom_call.1} parent=27 // pred_fallthru
          _
      $region28: #{tpu_custom_call.1} parent=5 // pred_fallthru
        _
      %p235 = scmp.le.s32.totalorder 1, %s18
      %p236 = scmp.lt.s32.totalorder %s18, 3
      %p237 = pnand %p235, %p236
      %p238 = pneg %p237
      // Predicated region
      $region37: #{tpu_custom_call.1} parent=5 // pred_check
        _
      $region38: #{tpu_custom_call.1} parent=5 // pred_check_branch
        %240 = sbr.rel (%p237) target = $region40
      $region39: #{tpu_custom_call.1} parent=5 // pred_region
        %s241 = ssub.s32 %s18, 1
        // Predicated region
        $region41: #{tpu_custom_call.1} parent=39 // pred_check
          %p242 = pneg %p39
        $region42: #{tpu_custom_call.1} parent=39 // pred_check_branch
          %244 = sbr.rel (%p242) target = $region44
        $region43: #{tpu_custom_call.1} parent=39 // pred_region
          %245 = dma.done [#allocation3], 128
        $region44: #{tpu_custom_call.1} parent=39 // pred_fallthru
          _
        %s246 = sand.u32 %s23, 1
        %s247 = scalar_lea.sflag [#allocation6], %s246
        %s248 = sand.u32 %s52, 1
        %s249 = smul.addr %s248, 1024
        %s250 = scalar_lea.vmem [#allocation5], %s249
        // Predicated region
        $region45: #{tpu_custom_call.1} parent=39 // pred_check
          %p251 = pneg %p65
        $region46: #{tpu_custom_call.1} parent=39 // pred_check_branch
          %253 = sbr.rel (%p251) target = $region48
        $region47: #{tpu_custom_call.1} parent=39 // pred_region
          %254 = dma.done %s247, 16384
        $region48: #{tpu_custom_call.1} parent=39 // pred_fallthru
          _
        %s255 = sand.u32 %s23, 1
        %s256 = scalar_lea.sflag [#allocation6], %s255
        %s257 = sand.u32 %s78, 1
        %s258 = smul.addr %s257, 8
        %s259 = scalar_lea.vmem [#allocation7], %s258
        // Predicated region
        $region49: #{tpu_custom_call.1} parent=39 // pred_check
          %p260 = pneg %p91
        $region50: #{tpu_custom_call.1} parent=39 // pred_check_branch
          %262 = sbr.rel (%p260) target = $region52
        $region51: #{tpu_custom_call.1} parent=39 // pred_region
          %263 = dma.done %s256, 128
        $region52: #{tpu_custom_call.1} parent=39 // pred_fallthru
          _
        %p264 = pneg %p39
        %p265 = pneg %p36
        %s266 = sand.u32 %s23, 1
        %s267 = scalar_lea.sflag [#allocation6], %s266
        %s268 = sand.u32 %s52, 1
        %s269 = smul.addr %s268, 1024
        %s270 = scalar_lea.vmem [#allocation5], %s269
        %p271 = pneg %p65
        %p272 = pneg %p62
        %s273 = sand.u32 %s23, 1
        %s274 = scalar_lea.sflag [#allocation6], %s273
        %s275 = sand.u32 %s78, 1
        %s276 = smul.addr %s275, 8
        %s277 = scalar_lea.vmem [#allocation7], %s276
        %p278 = pneg %p91
        %p279 = pneg %p88
        %p280 = pneg %p112
        %p281 = pneg %p109
        %p282 = pneg %p133
        %p283 = pneg %p130
        %p284 = pneg %p159
        %p285 = pneg %p156
        %s286 = sand.u32 %s146, 1
        %s287 = scalar_lea.sflag [#allocation4], %s286
        %s288 = sand.u32 %s146, 1
        %s289 = smul.addr %s288, 32
        %s290 = scalar_lea.vmem [#allocation8], %s289
        %s291 = smul.u32 8, %s23
        %s292 = smul.u32 8, %s23
        %v293 = vld [vmem:[#allocation2] sm:$0xff]
        %v294 = vld [vmem:[%s250] sm:$0xff]
        %v295 = vld [vmem:[%s250 + $0x8] sm:$0xff]
        %v296 = vld [vmem:[%s250 + $0x10] sm:$0xff]
        %v297 = vld [vmem:[%s250 + $0x18] sm:$0xff]
        %v298 = vld [vmem:[%s250 + $0x20] sm:$0xff]
        %v299 = vld [vmem:[%s250 + $0x28] sm:$0xff]
        %v300 = vld [vmem:[%s250 + $0x30] sm:$0xff]
        %v301 = vld [vmem:[%s250 + $0x38] sm:$0xff]
        %v302 = vld [vmem:[%s250 + $0x40] sm:$0xff]
        %v303 = vld [vmem:[%s250 + $0x48] sm:$0xff]
        %v304 = vld [vmem:[%s250 + $0x50] sm:$0xff]
        %v305 = vld [vmem:[%s250 + $0x58] sm:$0xff]
        %v306 = vld [vmem:[%s250 + $0x60] sm:$0xff]
        %v307 = vld [vmem:[%s250 + $0x68] sm:$0xff]
        %v308 = vld [vmem:[%s250 + $0x70] sm:$0xff]
        %v309 = vld [vmem:[%s250 + $0x78] sm:$0xff]
        %v310 = vld [vmem:[%s250 + $0x80] sm:$0xff]
        %v311 = vld [vmem:[%s250 + $0x88] sm:$0xff]
        %v312 = vld [vmem:[%s250 + $0x90] sm:$0xff]
        %v313 = vld [vmem:[%s250 + $0x98] sm:$0xff]
        %v314 = vld [vmem:[%s250 + $0xa0] sm:$0xff]
        %v315 = vld [vmem:[%s250 + $0xa8] sm:$0xff]
        %v316 = vld [vmem:[%s250 + $0xb0] sm:$0xff]
        %v317 = vld [vmem:[%s250 + $0xb8] sm:$0xff]
        %v318 = vld [vmem:[%s250 + $0xc0] sm:$0xff]
        %v319 = vld [vmem:[%s250 + $0xc8] sm:$0xff]
        %v320 = vld [vmem:[%s250 + $0xd0] sm:$0xff]
        %v321 = vld [vmem:[%s250 + $0xd8] sm:$0xff]
        %v322 = vld [vmem:[%s250 + $0xe0] sm:$0xff]
        %v323 = vld [vmem:[%s250 + $0xe8] sm:$0xff]
        %v324 = vld [vmem:[%s250 + $0xf0] sm:$0xff]
        %v325 = vld [vmem:[%s250 + $0xf8] sm:$0xff]
        %v326 = vld [vmem:[%s250 + $0x100] sm:$0xff]
        %v327 = vld [vmem:[%s250 + $0x108] sm:$0xff]
        %v328 = vld [vmem:[%s250 + $0x110] sm:$0xff]
        %v329 = vld [vmem:[%s250 + $0x118] sm:$0xff]
        %v330 = vld [vmem:[%s250 + $0x120] sm:$0xff]
        %v331 = vld [vmem:[%s250 + $0x128] sm:$0xff]
        %v332 = vld [vmem:[%s250 + $0x130] sm:$0xff]
        %v333 = vld [vmem:[%s250 + $0x138] sm:$0xff]
        %v334 = vld [vmem:[%s250 + $0x140] sm:$0xff]
        %v335 = vld [vmem:[%s250 + $0x148] sm:$0xff]
        %v336 = vld [vmem:[%s250 + $0x150] sm:$0xff]
        %v337 = vld [vmem:[%s250 + $0x158] sm:$0xff]
        %v338 = vld [vmem:[%s250 + $0x160] sm:$0xff]
        %v339 = vld [vmem:[%s250 + $0x168] sm:$0xff]
        %v340 = vld [vmem:[%s250 + $0x170] sm:$0xff]
        %v341 = vld [vmem:[%s250 + $0x178] sm:$0xff]
        %v342 = vld [vmem:[%s250 + $0x180] sm:$0xff]
        %v343 = vld [vmem:[%s250 + $0x188] sm:$0xff]
        %v344 = vld [vmem:[%s250 + $0x190] sm:$0xff]
        %v345 = vld [vmem:[%s250 + $0x198] sm:$0xff]
        %v346 = vld [vmem:[%s250 + $0x1a0] sm:$0xff]
        %v347 = vld [vmem:[%s250 + $0x1a8] sm:$0xff]
        %v348 = vld [vmem:[%s250 + $0x1b0] sm:$0xff]
        %v349 = vld [vmem:[%s250 + $0x1b8] sm:$0xff]
        %v350 = vld [vmem:[%s250 + $0x1c0] sm:$0xff]
        %v351 = vld [vmem:[%s250 + $0x1c8] sm:$0xff]
        %v352 = vld [vmem:[%s250 + $0x1d0] sm:$0xff]
        %v353 = vld [vmem:[%s250 + $0x1d8] sm:$0xff]
        %v354 = vld [vmem:[%s250 + $0x1e0] sm:$0xff]
        %v355 = vld [vmem:[%s250 + $0x1e8] sm:$0xff]
        %v356 = vld [vmem:[%s250 + $0x1f0] sm:$0xff]
        %v357 = vld [vmem:[%s250 + $0x1f8] sm:$0xff]
        %v358 = vld [vmem:[%s250 + $0x200] sm:$0xff]
        %v359 = vld [vmem:[%s250 + $0x208] sm:$0xff]
        %v360 = vld [vmem:[%s250 + $0x210] sm:$0xff]
        %v361 = vld [vmem:[%s250 + $0x218] sm:$0xff]
        %v362 = vld [vmem:[%s250 + $0x220] sm:$0xff]
        %v363 = vld [vmem:[%s250 + $0x228] sm:$0xff]
        %v364 = vld [vmem:[%s250 + $0x230] sm:$0xff]
        %v365 = vld [vmem:[%s250 + $0x238] sm:$0xff]
        %v366 = vld [vmem:[%s250 + $0x240] sm:$0xff]
        %v367 = vld [vmem:[%s250 + $0x248] sm:$0xff]
        %v368 = vld [vmem:[%s250 + $0x250] sm:$0xff]
        %v369 = vld [vmem:[%s250 + $0x258] sm:$0xff]
        %v370 = vld [vmem:[%s250 + $0x260] sm:$0xff]
        %v371 = vld [vmem:[%s250 + $0x268] sm:$0xff]
        %v372 = vld [vmem:[%s250 + $0x270] sm:$0xff]
        %v373 = vld [vmem:[%s250 + $0x278] sm:$0xff]
        %v374 = vld [vmem:[%s250 + $0x280] sm:$0xff]
        %v375 = vld [vmem:[%s250 + $0x288] sm:$0xff]
        %v376 = vld [vmem:[%s250 + $0x290] sm:$0xff]
        %v377 = vld [vmem:[%s250 + $0x298] sm:$0xff]
        %v378 = vld [vmem:[%s250 + $0x2a0] sm:$0xff]
        %v379 = vld [vmem:[%s250 + $0x2a8] sm:$0xff]
        %v380 = vld [vmem:[%s250 + $0x2b0] sm:$0xff]
        %v381 = vld [vmem:[%s250 + $0x2b8] sm:$0xff]
        %v382 = vld [vmem:[%s250 + $0x2c0] sm:$0xff]
        %v383 = vld [vmem:[%s250 + $0x2c8] sm:$0xff]
        %v384 = vld [vmem:[%s250 + $0x2d0] sm:$0xff]
        %v385 = vld [vmem:[%s250 + $0x2d8] sm:$0xff]
        %v386 = vld [vmem:[%s250 + $0x2e0] sm:$0xff]
        %v387 = vld [vmem:[%s250 + $0x2e8] sm:$0xff]
        %v388 = vld [vmem:[%s250 + $0x2f0] sm:$0xff]
        %v389 = vld [vmem:[%s250 + $0x2f8] sm:$0xff]
        %v390 = vld [vmem:[%s250 + $0x300] sm:$0xff]
        %v391 = vld [vmem:[%s250 + $0x308] sm:$0xff]
        %v392 = vld [vmem:[%s250 + $0x310] sm:$0xff]
        %v393 = vld [vmem:[%s250 + $0x318] sm:$0xff]
        %v394 = vld [vmem:[%s250 + $0x320] sm:$0xff]
        %v395 = vld [vmem:[%s250 + $0x328] sm:$0xff]
        %v396 = vld [vmem:[%s250 + $0x330] sm:$0xff]
        %v397 = vld [vmem:[%s250 + $0x338] sm:$0xff]
        %v398 = vld [vmem:[%s250 + $0x340] sm:$0xff]
        %v399 = vld [vmem:[%s250 + $0x348] sm:$0xff]
        %v400 = vld [vmem:[%s250 + $0x350] sm:$0xff]
        %v401 = vld [vmem:[%s250 + $0x358] sm:$0xff]
        %v402 = vld [vmem:[%s250 + $0x360] sm:$0xff]
        %v403 = vld [vmem:[%s250 + $0x368] sm:$0xff]
        %v404 = vld [vmem:[%s250 + $0x370] sm:$0xff]
        %v405 = vld [vmem:[%s250 + $0x378] sm:$0xff]
        %v406 = vld [vmem:[%s250 + $0x380] sm:$0xff]
        %v407 = vld [vmem:[%s250 + $0x388] sm:$0xff]
        %v408 = vld [vmem:[%s250 + $0x390] sm:$0xff]
        %v409 = vld [vmem:[%s250 + $0x398] sm:$0xff]
        %v410 = vld [vmem:[%s250 + $0x3a0] sm:$0xff]
        %v411 = vld [vmem:[%s250 + $0x3a8] sm:$0xff]
        %v412 = vld [vmem:[%s250 + $0x3b0] sm:$0xff]
        %v413 = vld [vmem:[%s250 + $0x3b8] sm:$0xff]
        %v414 = vld [vmem:[%s250 + $0x3c0] sm:$0xff]
        %v415 = vld [vmem:[%s250 + $0x3c8] sm:$0xff]
        %v416 = vld [vmem:[%s250 + $0x3d0] sm:$0xff]
        %v417 = vld [vmem:[%s250 + $0x3d8] sm:$0xff]
        %v418 = vld [vmem:[%s250 + $0x3e0] sm:$0xff]
        %v419 = vld [vmem:[%s250 + $0x3e8] sm:$0xff]
        %v420 = vld [vmem:[%s250 + $0x3f0] sm:$0xff]
        %v421 = vld [vmem:[%s250 + $0x3f8] sm:$0xff]
        %v422 = vld [vmem:[%s259] sm:$0xff]
        %v423 = vunpack.c.l.bf16 %v422
        %v424 = vunpack.c.h.bf16 %v422
        %v427 = vlaneseq
        %v428 = vshrl.u32 %v427, 7
        %v429 = vsub.s32 0, %v428
        %v430 = vrot.slane %v423, %v429
        %v431 = vlaneseq
        %v432 = vshrl.u32 %v431, 7
        %v433 = vsub.s32 2, %v432
        %v434 = vrot.slane %v423, %v433
        %v435 = vlaneseq
        %v436 = vshrl.u32 %v435, 7
        %v437 = vsub.s32 4, %v436
        %v438 = vrot.slane %v423, %v437
        %v439 = vlaneseq
        %v440 = vshrl.u32 %v439, 7
        %v441 = vsub.s32 6, %v440
        %v442 = vrot.slane %v423, %v441
        %v443 = vlaneseq
        %v444 = vshrl.u32 %v443, 7
        %v445 = vsub.s32 0, %v444
        %v446 = vrot.slane %v424, %v445
        %v447 = vlaneseq
        %v448 = vshrl.u32 %v447, 7
        %v449 = vsub.s32 2, %v448
        %v450 = vrot.slane %v424, %v449
        %v451 = vlaneseq
        %v452 = vshrl.u32 %v451, 7
        %v453 = vsub.s32 4, %v452
        %v454 = vrot.slane %v424, %v453
        %v455 = vlaneseq
        %v456 = vshrl.u32 %v455, 7
        %v457 = vsub.s32 6, %v456
        %v458 = vrot.slane %v424, %v457
        %v467 = vlaneseq
        %v468 = vshrl.u32 %v467, 7
        %v469 = vsub.s32 0, %v468
        %v470 = vrot.slane %v430, %v469
        %v471 = vlaneseq
        %v472 = vshrl.u32 %v471, 7
        %v473 = vsub.s32 0, %v472
        %v474 = vrot.slane %v434, %v473
        %v475 = vlaneseq
        %v476 = vshrl.u32 %v475, 7
        %v477 = vsub.s32 0, %v476
        %v478 = vrot.slane %v438, %v477
        %v479 = vlaneseq
        %v480 = vshrl.u32 %v479, 7
        %v481 = vsub.s32 0, %v480
        %v482 = vrot.slane %v442, %v481
        %v483 = vlaneseq
        %v484 = vshrl.u32 %v483, 7
        %v485 = vsub.s32 0, %v484
        %v486 = vrot.slane %v446, %v485
        %v487 = vlaneseq
        %v488 = vshrl.u32 %v487, 7
        %v489 = vsub.s32 0, %v488
        %v490 = vrot.slane %v450, %v489
        %v491 = vlaneseq
        %v492 = vshrl.u32 %v491, 7
        %v493 = vsub.s32 0, %v492
        %v494 = vrot.slane %v454, %v493
        %v495 = vlaneseq
        %v496 = vshrl.u32 %v495, 7
        %v497 = vsub.s32 0, %v496
        %v498 = vrot.slane %v458, %v497
        %v500 = vunpack.c.l.b16 %v293
        %v501 = vunpack.c.h.b16 %v293
        %v502 = vpack.c.b16 %v500, %v500
        %v503 = vpack.c.b16 %v501, %v501
        %v634 = vunpack.c.l.b16 %v294
        %v635 = vunpack.c.h.b16 %v294
        %v636 = vunpack.c.l.b16 %v295
        %v637 = vunpack.c.h.b16 %v295
        %v638 = vunpack.c.l.b16 %v296
        %v639 = vunpack.c.h.b16 %v296
        %v640 = vunpack.c.l.b16 %v297
        %v641 = vunpack.c.h.b16 %v297
        %v642 = vunpack.c.l.b16 %v298
        %v643 = vunpack.c.h.b16 %v298
        %v644 = vunpack.c.l.b16 %v299
        %v645 = vunpack.c.h.b16 %v299
        %v646 = vunpack.c.l.b16 %v300
        %v647 = vunpack.c.h.b16 %v300
        %v648 = vunpack.c.l.b16 %v301
        %v649 = vunpack.c.h.b16 %v301
        %v650 = vunpack.c.l.b16 %v302
        %v651 = vunpack.c.h.b16 %v302
        %v652 = vunpack.c.l.b16 %v303
        %v653 = vunpack.c.h.b16 %v303
        %v654 = vunpack.c.l.b16 %v304
        %v655 = vunpack.c.h.b16 %v304
        %v656 = vunpack.c.l.b16 %v305
        %v657 = vunpack.c.h.b16 %v305
        %v658 = vunpack.c.l.b16 %v306
        %v659 = vunpack.c.h.b16 %v306
        %v660 = vunpack.c.l.b16 %v307
        %v661 = vunpack.c.h.b16 %v307
        %v662 = vunpack.c.l.b16 %v308
        %v663 = vunpack.c.h.b16 %v308
        %v664 = vunpack.c.l.b16 %v309
        %v665 = vunpack.c.h.b16 %v309
        %v666 = vunpack.c.l.b16 %v310
        %v667 = vunpack.c.h.b16 %v310
        %v668 = vunpack.c.l.b16 %v311
        %v669 = vunpack.c.h.b16 %v311
        %v670 = vunpack.c.l.b16 %v312
        %v671 = vunpack.c.h.b16 %v312
        %v672 = vunpack.c.l.b16 %v313
        %v673 = vunpack.c.h.b16 %v313
        %v674 = vunpack.c.l.b16 %v314
        %v675 = vunpack.c.h.b16 %v314
        %v676 = vunpack.c.l.b16 %v315
        %v677 = vunpack.c.h.b16 %v315
        %v678 = vunpack.c.l.b16 %v316
        %v679 = vunpack.c.h.b16 %v316
        %v680 = vunpack.c.l.b16 %v317
        %v681 = vunpack.c.h.b16 %v317
        %v682 = vunpack.c.l.b16 %v318
        %v683 = vunpack.c.h.b16 %v318
        %v684 = vunpack.c.l.b16 %v319
        %v685 = vunpack.c.h.b16 %v319
        %v686 = vunpack.c.l.b16 %v320
        %v687 = vunpack.c.h.b16 %v320
        %v688 = vunpack.c.l.b16 %v321
        %v689 = vunpack.c.h.b16 %v321
        %v690 = vunpack.c.l.b16 %v322
        %v691 = vunpack.c.h.b16 %v322
        %v692 = vunpack.c.l.b16 %v323
        %v693 = vunpack.c.h.b16 %v323
        %v694 = vunpack.c.l.b16 %v324
        %v695 = vunpack.c.h.b16 %v324
        %v696 = vunpack.c.l.b16 %v325
        %v697 = vunpack.c.h.b16 %v325
        %v698 = vunpack.c.l.b16 %v326
        %v699 = vunpack.c.h.b16 %v326
        %v700 = vunpack.c.l.b16 %v327
        %v701 = vunpack.c.h.b16 %v327
        %v702 = vunpack.c.l.b16 %v328
        %v703 = vunpack.c.h.b16 %v328
        %v704 = vunpack.c.l.b16 %v329
        %v705 = vunpack.c.h.b16 %v329
        %v706 = vunpack.c.l.b16 %v330
        %v707 = vunpack.c.h.b16 %v330
        %v708 = vunpack.c.l.b16 %v331
        %v709 = vunpack.c.h.b16 %v331
        %v710 = vunpack.c.l.b16 %v332
        %v711 = vunpack.c.h.b16 %v332
        %v712 = vunpack.c.l.b16 %v333
        %v713 = vunpack.c.h.b16 %v333
        %v714 = vunpack.c.l.b16 %v334
        %v715 = vunpack.c.h.b16 %v334
        %v716 = vunpack.c.l.b16 %v335
        %v717 = vunpack.c.h.b16 %v335
        %v718 = vunpack.c.l.b16 %v336
        %v719 = vunpack.c.h.b16 %v336
        %v720 = vunpack.c.l.b16 %v337
        %v721 = vunpack.c.h.b16 %v337
        %v722 = vunpack.c.l.b16 %v338
        %v723 = vunpack.c.h.b16 %v338
        %v724 = vunpack.c.l.b16 %v339
        %v725 = vunpack.c.h.b16 %v339
        %v726 = vunpack.c.l.b16 %v340
        %v727 = vunpack.c.h.b16 %v340
        %v728 = vunpack.c.l.b16 %v341
        %v729 = vunpack.c.h.b16 %v341
        %v730 = vunpack.c.l.b16 %v342
        %v731 = vunpack.c.h.b16 %v342
        %v732 = vunpack.c.l.b16 %v343
        %v733 = vunpack.c.h.b16 %v343
        %v734 = vunpack.c.l.b16 %v344
        %v735 = vunpack.c.h.b16 %v344
        %v736 = vunpack.c.l.b16 %v345
        %v737 = vunpack.c.h.b16 %v345
        %v738 = vunpack.c.l.b16 %v346
        %v739 = vunpack.c.h.b16 %v346
        %v740 = vunpack.c.l.b16 %v347
        %v741 = vunpack.c.h.b16 %v347
        %v742 = vunpack.c.l.b16 %v348
        %v743 = vunpack.c.h.b16 %v348
        %v744 = vunpack.c.l.b16 %v349
        %v745 = vunpack.c.h.b16 %v349
        %v746 = vunpack.c.l.b16 %v350
        %v747 = vunpack.c.h.b16 %v350
        %v748 = vunpack.c.l.b16 %v351
        %v749 = vunpack.c.h.b16 %v351
        %v750 = vunpack.c.l.b16 %v352
        %v751 = vunpack.c.h.b16 %v352
        %v752 = vunpack.c.l.b16 %v353
        %v753 = vunpack.c.h.b16 %v353
        %v754 = vunpack.c.l.b16 %v354
        %v755 = vunpack.c.h.b16 %v354
        %v756 = vunpack.c.l.b16 %v355
        %v757 = vunpack.c.h.b16 %v355
        %v758 = vunpack.c.l.b16 %v356
        %v759 = vunpack.c.h.b16 %v356
        %v760 = vunpack.c.l.b16 %v357
        %v761 = vunpack.c.h.b16 %v357
        %v762 = vunpack.c.l.b16 %v358
        %v763 = vunpack.c.h.b16 %v358
        %v764 = vunpack.c.l.b16 %v359
        %v765 = vunpack.c.h.b16 %v359
        %v766 = vunpack.c.l.b16 %v360
        %v767 = vunpack.c.h.b16 %v360
        %v768 = vunpack.c.l.b16 %v361
        %v769 = vunpack.c.h.b16 %v361
        %v770 = vunpack.c.l.b16 %v362
        %v771 = vunpack.c.h.b16 %v362
        %v772 = vunpack.c.l.b16 %v363
        %v773 = vunpack.c.h.b16 %v363
        %v774 = vunpack.c.l.b16 %v364
        %v775 = vunpack.c.h.b16 %v364
        %v776 = vunpack.c.l.b16 %v365
        %v777 = vunpack.c.h.b16 %v365
        %v778 = vunpack.c.l.b16 %v366
        %v779 = vunpack.c.h.b16 %v366
        %v780 = vunpack.c.l.b16 %v367
        %v781 = vunpack.c.h.b16 %v367
        %v782 = vunpack.c.l.b16 %v368
        %v783 = vunpack.c.h.b16 %v368
        %v784 = vunpack.c.l.b16 %v369
        %v785 = vunpack.c.h.b16 %v369
        %v786 = vunpack.c.l.b16 %v370
        %v787 = vunpack.c.h.b16 %v370
        %v788 = vunpack.c.l.b16 %v371
        %v789 = vunpack.c.h.b16 %v371
        %v790 = vunpack.c.l.b16 %v372
        %v791 = vunpack.c.h.b16 %v372
        %v792 = vunpack.c.l.b16 %v373
        %v793 = vunpack.c.h.b16 %v373
        %v794 = vunpack.c.l.b16 %v374
        %v795 = vunpack.c.h.b16 %v374
        %v796 = vunpack.c.l.b16 %v375
        %v797 = vunpack.c.h.b16 %v375
        %v798 = vunpack.c.l.b16 %v376
        %v799 = vunpack.c.h.b16 %v376
        %v800 = vunpack.c.l.b16 %v377
        %v801 = vunpack.c.h.b16 %v377
        %v802 = vunpack.c.l.b16 %v378
        %v803 = vunpack.c.h.b16 %v378
        %v804 = vunpack.c.l.b16 %v379
        %v805 = vunpack.c.h.b16 %v379
        %v806 = vunpack.c.l.b16 %v380
        %v807 = vunpack.c.h.b16 %v380
        %v808 = vunpack.c.l.b16 %v381
        %v809 = vunpack.c.h.b16 %v381
        %v810 = vunpack.c.l.b16 %v382
        %v811 = vunpack.c.h.b16 %v382
        %v812 = vunpack.c.l.b16 %v383
        %v813 = vunpack.c.h.b16 %v383
        %v814 = vunpack.c.l.b16 %v384
        %v815 = vunpack.c.h.b16 %v384
        %v816 = vunpack.c.l.b16 %v385
        %v817 = vunpack.c.h.b16 %v385
        %v818 = vunpack.c.l.b16 %v386
        %v819 = vunpack.c.h.b16 %v386
        %v820 = vunpack.c.l.b16 %v387
        %v821 = vunpack.c.h.b16 %v387
        %v822 = vunpack.c.l.b16 %v388
        %v823 = vunpack.c.h.b16 %v388
        %v824 = vunpack.c.l.b16 %v389
        %v825 = vunpack.c.h.b16 %v389
        %v826 = vunpack.c.l.b16 %v390
        %v827 = vunpack.c.h.b16 %v390
        %v828 = vunpack.c.l.b16 %v391
        %v829 = vunpack.c.h.b16 %v391
        %v830 = vunpack.c.l.b16 %v392
        %v831 = vunpack.c.h.b16 %v392
        %v832 = vunpack.c.l.b16 %v393
        %v833 = vunpack.c.h.b16 %v393
        %v834 = vunpack.c.l.b16 %v394
        %v835 = vunpack.c.h.b16 %v394
        %v836 = vunpack.c.l.b16 %v395
        %v837 = vunpack.c.h.b16 %v395
        %v838 = vunpack.c.l.b16 %v396
        %v839 = vunpack.c.h.b16 %v396
        %v840 = vunpack.c.l.b16 %v397
        %v841 = vunpack.c.h.b16 %v397
        %v842 = vunpack.c.l.b16 %v398
        %v843 = vunpack.c.h.b16 %v398
        %v844 = vunpack.c.l.b16 %v399
        %v845 = vunpack.c.h.b16 %v399
        %v846 = vunpack.c.l.b16 %v400
        %v847 = vunpack.c.h.b16 %v400
        %v848 = vunpack.c.l.b16 %v401
        %v849 = vunpack.c.h.b16 %v401
        %v850 = vunpack.c.l.b16 %v402
        %v851 = vunpack.c.h.b16 %v402
        %v852 = vunpack.c.l.b16 %v403
        %v853 = vunpack.c.h.b16 %v403
        %v854 = vunpack.c.l.b16 %v404
        %v855 = vunpack.c.h.b16 %v404
        %v856 = vunpack.c.l.b16 %v405
        %v857 = vunpack.c.h.b16 %v405
        %v858 = vunpack.c.l.b16 %v406
        %v859 = vunpack.c.h.b16 %v406
        %v860 = vunpack.c.l.b16 %v407
        %v861 = vunpack.c.h.b16 %v407
        %v862 = vunpack.c.l.b16 %v408
        %v863 = vunpack.c.h.b16 %v408
        %v864 = vunpack.c.l.b16 %v409
        %v865 = vunpack.c.h.b16 %v409
        %v866 = vunpack.c.l.b16 %v410
        %v867 = vunpack.c.h.b16 %v410
        %v868 = vunpack.c.l.b16 %v411
        %v869 = vunpack.c.h.b16 %v411
        %v870 = vunpack.c.l.b16 %v412
        %v871 = vunpack.c.h.b16 %v412
        %v872 = vunpack.c.l.b16 %v413
        %v873 = vunpack.c.h.b16 %v413
        %v874 = vunpack.c.l.b16 %v414
        %v875 = vunpack.c.h.b16 %v414
        %v876 = vunpack.c.l.b16 %v415
        %v877 = vunpack.c.h.b16 %v415
        %v878 = vunpack.c.l.b16 %v416
        %v879 = vunpack.c.h.b16 %v416
        %v880 = vunpack.c.l.b16 %v417
        %v881 = vunpack.c.h.b16 %v417
        %v882 = vunpack.c.l.b16 %v418
        %v883 = vunpack.c.h.b16 %v418
        %v884 = vunpack.c.l.b16 %v419
        %v885 = vunpack.c.h.b16 %v419
        %v886 = vunpack.c.l.b16 %v420
        %v887 = vunpack.c.h.b16 %v420
        %v888 = vunpack.c.l.b16 %v421
        %v889 = vunpack.c.h.b16 %v421
        %v890 = vpack.c.b16 %v642, %v634
        %v891 = vpack.c.b16 %v643, %v635
        %v892 = vpack.c.b16 %v644, %v636
        %v893 = vpack.c.b16 %v645, %v637
        %v894 = vpack.c.b16 %v646, %v638
        %v895 = vpack.c.b16 %v647, %v639
        %v896 = vpack.c.b16 %v648, %v640
        %v897 = vpack.c.b16 %v649, %v641
        %v898 = vpack.c.b16 %v658, %v650
        %v899 = vpack.c.b16 %v659, %v651
        %v900 = vpack.c.b16 %v660, %v652
        %v901 = vpack.c.b16 %v661, %v653
        %v902 = vpack.c.b16 %v662, %v654
        %v903 = vpack.c.b16 %v663, %v655
        %v904 = vpack.c.b16 %v664, %v656
        %v905 = vpack.c.b16 %v665, %v657
        %v906 = vpack.c.b16 %v674, %v666
        %v907 = vpack.c.b16 %v675, %v667
        %v908 = vpack.c.b16 %v676, %v668
        %v909 = vpack.c.b16 %v677, %v669
        %v910 = vpack.c.b16 %v678, %v670
        %v911 = vpack.c.b16 %v679, %v671
        %v912 = vpack.c.b16 %v680, %v672
        %v913 = vpack.c.b16 %v681, %v673
        %v914 = vpack.c.b16 %v690, %v682
        %v915 = vpack.c.b16 %v691, %v683
        %v916 = vpack.c.b16 %v692, %v684
        %v917 = vpack.c.b16 %v693, %v685
        %v918 = vpack.c.b16 %v694, %v686
        %v919 = vpack.c.b16 %v695, %v687
        %v920 = vpack.c.b16 %v696, %v688
        %v921 = vpack.c.b16 %v697, %v689
        %v922 = vpack.c.b16 %v706, %v698
        %v923 = vpack.c.b16 %v707, %v699
        %v924 = vpack.c.b16 %v708, %v700
        %v925 = vpack.c.b16 %v709, %v701
        %v926 = vpack.c.b16 %v710, %v702
        %v927 = vpack.c.b16 %v711, %v703
        %v928 = vpack.c.b16 %v712, %v704
        %v929 = vpack.c.b16 %v713, %v705
        %v930 = vpack.c.b16 %v722, %v714
        %v931 = vpack.c.b16 %v723, %v715
        %v932 = vpack.c.b16 %v724, %v716
        %v933 = vpack.c.b16 %v725, %v717
        %v934 = vpack.c.b16 %v726, %v718
        %v935 = vpack.c.b16 %v727, %v719
        %v936 = vpack.c.b16 %v728, %v720
        %v937 = vpack.c.b16 %v729, %v721
        %v938 = vpack.c.b16 %v738, %v730
        %v939 = vpack.c.b16 %v739, %v731
        %v940 = vpack.c.b16 %v740, %v732
        %v941 = vpack.c.b16 %v741, %v733
        %v942 = vpack.c.b16 %v742, %v734
        %v943 = vpack.c.b16 %v743, %v735
        %v944 = vpack.c.b16 %v744, %v736
        %v945 = vpack.c.b16 %v745, %v737
        %v946 = vpack.c.b16 %v754, %v746
        %v947 = vpack.c.b16 %v755, %v747
        %v948 = vpack.c.b16 %v756, %v748
        %v949 = vpack.c.b16 %v757, %v749
        %v950 = vpack.c.b16 %v758, %v750
        %v951 = vpack.c.b16 %v759, %v751
        %v952 = vpack.c.b16 %v760, %v752
        %v953 = vpack.c.b16 %v761, %v753
        %v954 = vpack.c.b16 %v770, %v762
        %v955 = vpack.c.b16 %v771, %v763
        %v956 = vpack.c.b16 %v772, %v764
        %v957 = vpack.c.b16 %v773, %v765
        %v958 = vpack.c.b16 %v774, %v766
        %v959 = vpack.c.b16 %v775, %v767
        %v960 = vpack.c.b16 %v776, %v768
        %v961 = vpack.c.b16 %v777, %v769
        %v962 = vpack.c.b16 %v786, %v778
        %v963 = vpack.c.b16 %v787, %v779
        %v964 = vpack.c.b16 %v788, %v780
        %v965 = vpack.c.b16 %v789, %v781
        %v966 = vpack.c.b16 %v790, %v782
        %v967 = vpack.c.b16 %v791, %v783
        %v968 = vpack.c.b16 %v792, %v784
        %v969 = vpack.c.b16 %v793, %v785
        %v970 = vpack.c.b16 %v802, %v794
        %v971 = vpack.c.b16 %v803, %v795
        %v972 = vpack.c.b16 %v804, %v796
        %v973 = vpack.c.b16 %v805, %v797
        %v974 = vpack.c.b16 %v806, %v798
        %v975 = vpack.c.b16 %v807, %v799
        %v976 = vpack.c.b16 %v808, %v800
        %v977 = vpack.c.b16 %v809, %v801
        %v978 = vpack.c.b16 %v818, %v810
        %v979 = vpack.c.b16 %v819, %v811
        %v980 = vpack.c.b16 %v820, %v812
        %v981 = vpack.c.b16 %v821, %v813
        %v982 = vpack.c.b16 %v822, %v814
        %v983 = vpack.c.b16 %v823, %v815
        %v984 = vpack.c.b16 %v824, %v816
        %v985 = vpack.c.b16 %v825, %v817
        %v986 = vpack.c.b16 %v834, %v826
        %v987 = vpack.c.b16 %v835, %v827
        %v988 = vpack.c.b16 %v836, %v828
        %v989 = vpack.c.b16 %v837, %v829
        %v990 = vpack.c.b16 %v838, %v830
        %v991 = vpack.c.b16 %v839, %v831
        %v992 = vpack.c.b16 %v840, %v832
        %v993 = vpack.c.b16 %v841, %v833
        %v994 = vpack.c.b16 %v850, %v842
        %v995 = vpack.c.b16 %v851, %v843
        %v996 = vpack.c.b16 %v852, %v844
        %v997 = vpack.c.b16 %v853, %v845
        %v998 = vpack.c.b16 %v854, %v846
        %v999 = vpack.c.b16 %v855, %v847
        %v1000 = vpack.c.b16 %v856, %v848
        %v1001 = vpack.c.b16 %v857, %v849
        %v1002 = vpack.c.b16 %v866, %v858
        %v1003 = vpack.c.b16 %v867, %v859
        %v1004 = vpack.c.b16 %v868, %v860
        %v1005 = vpack.c.b16 %v869, %v861
        %v1006 = vpack.c.b16 %v870, %v862
        %v1007 = vpack.c.b16 %v871, %v863
        %v1008 = vpack.c.b16 %v872, %v864
        %v1009 = vpack.c.b16 %v873, %v865
        %v1010 = vpack.c.b16 %v882, %v874
        %v1011 = vpack.c.b16 %v883, %v875
        %v1012 = vpack.c.b16 %v884, %v876
        %v1013 = vpack.c.b16 %v885, %v877
        %v1014 = vpack.c.b16 %v886, %v878
        %v1015 = vpack.c.b16 %v887, %v879
        %v1016 = vpack.c.b16 %v888, %v880
        %v1017 = vpack.c.b16 %v889, %v881
        %1146 = vmatprep.subr.bf16.mxu0 %v891
        %1147 = vmatpush1.bf16.msra.mxu0 %v890
        %1148 = vmatprep.subr.bf16.mxu0 %v899
        %1149 = vmatpush1.bf16.msra.mxu0 %v898
        %1150 = vmatprep.subr.bf16.mxu0 %v907
        %1151 = vmatpush1.bf16.msra.mxu0 %v906
        %1152 = vmatprep.subr.bf16.mxu0 %v915
        %1153 = vmatpush1.bf16.msra.mxu0 %v914
        %1154 = vmatprep.subr.bf16.mxu0 %v923
        %1155 = vmatpush1.bf16.msra.mxu0 %v922
        %1156 = vmatprep.subr.bf16.mxu0 %v931
        %1157 = vmatpush1.bf16.msra.mxu0 %v930
        %1158 = vmatprep.subr.bf16.mxu0 %v939
        %1159 = vmatpush1.bf16.msra.mxu0 %v938
        %1160 = vmatprep.subr.bf16.mxu0 %v947
        %1161 = vmatpush1.bf16.msra.mxu0 %v946
        %1162 = vmatprep.subr.bf16.mxu0 %v955
        %1163 = vmatpush1.bf16.msra.mxu0 %v954
        %1164 = vmatprep.subr.bf16.mxu0 %v963
        %1165 = vmatpush1.bf16.msra.mxu0 %v962
        %1166 = vmatprep.subr.bf16.mxu0 %v971
        %1167 = vmatpush1.bf16.msra.mxu0 %v970
        %1168 = vmatprep.subr.bf16.mxu0 %v979
        %1169 = vmatpush1.bf16.msra.mxu0 %v978
        %1170 = vmatprep.subr.bf16.mxu0 %v987
        %1171 = vmatpush1.bf16.msra.mxu0 %v986
        %1172 = vmatprep.subr.bf16.mxu0 %v995
        %1173 = vmatpush1.bf16.msra.mxu0 %v994
        %1174 = vmatprep.subr.bf16.mxu0 %v1003
        %1175 = vmatpush1.bf16.msra.mxu0 %v1002
        %1176 = vmatprep.subr.bf16.mxu0 %v1011
        %1177 = vmatpush1.bf16.msra.mxu0 %v1010
        %1178 = vmatprep.mubr.bf16.mxu0 %v503
        %1179 = vmatmul.mubr.bf16.gmra.mrb[0].mxu0 %v502
        %v1180 = vpop.f32.mrb[0].mxu0
        %v1181 = vadd.f32 %v470, %v1180
        %v1182 = vpop.f32.mrb[0].mxu0
        %v1183 = vadd.f32 %v474, %v1182
        %v1184 = vpop.f32.mrb[0].mxu0
        %v1185 = vpop.f32.mrb[0].mxu0
        %1186 = vdwg.mxu0
        %1187 = vmatprep.subr.bf16.mxu0 %v893
        %1188 = vmatpush1.bf16.msra.mxu0 %v892
        %1189 = vmatprep.subr.bf16.mxu0 %v901
        %1190 = vmatpush1.bf16.msra.mxu0 %v900
        %1191 = vmatprep.subr.bf16.mxu0 %v909
        %1192 = vmatpush1.bf16.msra.mxu0 %v908
        %1193 = vmatprep.subr.bf16.mxu0 %v917
        %1194 = vmatpush1.bf16.msra.mxu0 %v916
        %1195 = vmatprep.subr.bf16.mxu0 %v925
        %1196 = vmatpush1.bf16.msra.mxu0 %v924
        %1197 = vmatprep.subr.bf16.mxu0 %v933
        %1198 = vmatpush1.bf16.msra.mxu0 %v932
        %1199 = vmatprep.subr.bf16.mxu0 %v941
        %1200 = vmatpush1.bf16.msra.mxu0 %v940
        %1201 = vmatprep.subr.bf16.mxu0 %v949
        %1202 = vmatpush1.bf16.msra.mxu0 %v948
        %1203 = vmatprep.subr.bf16.mxu0 %v957
        %1204 = vmatpush1.bf16.msra.mxu0 %v956
        %1205 = vmatprep.subr.bf16.mxu0 %v965
        %1206 = vmatpush1.bf16.msra.mxu0 %v964
        %1207 = vmatprep.subr.bf16.mxu0 %v973
        %1208 = vmatpush1.bf16.msra.mxu0 %v972
        %1209 = vmatprep.subr.bf16.mxu0 %v981
        %1210 = vmatpush1.bf16.msra.mxu0 %v980
        %1211 = vmatprep.subr.bf16.mxu0 %v989
        %1212 = vmatpush1.bf16.msra.mxu0 %v988
        %1213 = vmatprep.subr.bf16.mxu0 %v997
        %1214 = vmatpush1.bf16.msra.mxu0 %v996
        %1215 = vmatprep.subr.bf16.mxu0 %v1005
        %1216 = vmatpush1.bf16.msra.mxu0 %v1004
        %1217 = vmatprep.subr.bf16.mxu0 %v1013
        %1218 = vmatpush1.bf16.msra.mxu0 %v1012
        %1219 = vmatprep.mubr.bf16.mxu0 %v503
        %1220 = vmatmul.mubr.bf16.gmra.mrb[0].mxu0 %v502
        %v1221 = vpop.f32.mrb[0].mxu0
        %v1222 = vadd.f32 %v478, %v1221
        %v1223 = vpop.f32.mrb[0].mxu0
        %v1224 = vadd.f32 %v482, %v1223
        %v1225 = vpop.f32.mrb[0].mxu0
        %v1226 = vpop.f32.mrb[0].mxu0
        %1227 = vdwg.mxu0
        %1228 = vmatprep.subr.bf16.mxu0 %v895
        %1229 = vmatpush1.bf16.msra.mxu0 %v894
        %1230 = vmatprep.subr.bf16.mxu0 %v903
        %1231 = vmatpush1.bf16.msra.mxu0 %v902
        %1232 = vmatprep.subr.bf16.mxu0 %v911
        %1233 = vmatpush1.bf16.msra.mxu0 %v910
        %1234 = vmatprep.subr.bf16.mxu0 %v919
        %1235 = vmatpush1.bf16.msra.mxu0 %v918
        %1236 = vmatprep.subr.bf16.mxu0 %v927
        %1237 = vmatpush1.bf16.msra.mxu0 %v926
        %1238 = vmatprep.subr.bf16.mxu0 %v935
        %1239 = vmatpush1.bf16.msra.mxu0 %v934
        %1240 = vmatprep.subr.bf16.mxu0 %v943
        %1241 = vmatpush1.bf16.msra.mxu0 %v942
        %1242 = vmatprep.subr.bf16.mxu0 %v951
        %1243 = vmatpush1.bf16.msra.mxu0 %v950
        %1244 = vmatprep.subr.bf16.mxu0 %v959
        %1245 = vmatpush1.bf16.msra.mxu0 %v958
        %1246 = vmatprep.subr.bf16.mxu0 %v967
        %1247 = vmatpush1.bf16.msra.mxu0 %v966
        %1248 = vmatprep.subr.bf16.mxu0 %v975
        %1249 = vmatpush1.bf16.msra.mxu0 %v974
        %1250 = vmatprep.subr.bf16.mxu0 %v983
        %1251 = vmatpush1.bf16.msra.mxu0 %v982
        %1252 = vmatprep.subr.bf16.mxu0 %v991
        %1253 = vmatpush1.bf16.msra.mxu0 %v990
        %1254 = vmatprep.subr.bf16.mxu0 %v999
        %1255 = vmatpush1.bf16.msra.mxu0 %v998
        %1256 = vmatprep.subr.bf16.mxu0 %v1007
        %1257 = vmatpush1.bf16.msra.mxu0 %v1006
        %1258 = vmatprep.subr.bf16.mxu0 %v1015
        %1259 = vmatpush1.bf16.msra.mxu0 %v1014
        %1260 = vmatprep.mubr.bf16.mxu0 %v503
        %1261 = vmatmul.mubr.bf16.gmra.mrb[0].mxu0 %v502
        %v1262 = vpop.f32.mrb[0].mxu0
        %v1263 = vadd.f32 %v486, %v1262
        %v1264 = vpop.f32.mrb[0].mxu0
        %v1265 = vadd.f32 %v490, %v1264
        %v1266 = vpop.f32.mrb[0].mxu0
        %v1267 = vpop.f32.mrb[0].mxu0
        %1268 = vdwg.mxu0
        %1269 = vmatprep.subr.bf16.mxu0 %v897
        %1270 = vmatpush1.bf16.msra.mxu0 %v896
        %1271 = vmatprep.subr.bf16.mxu0 %v905
        %1272 = vmatpush1.bf16.msra.mxu0 %v904
        %1273 = vmatprep.subr.bf16.mxu0 %v913
        %1274 = vmatpush1.bf16.msra.mxu0 %v912
        %1275 = vmatprep.subr.bf16.mxu0 %v921
        %1276 = vmatpush1.bf16.msra.mxu0 %v920
        %1277 = vmatprep.subr.bf16.mxu0 %v929
        %1278 = vmatpush1.bf16.msra.mxu0 %v928
        %1279 = vmatprep.subr.bf16.mxu0 %v937
        %1280 = vmatpush1.bf16.msra.mxu0 %v936
        %1281 = vmatprep.subr.bf16.mxu0 %v945
        %1282 = vmatpush1.bf16.msra.mxu0 %v944
        %1283 = vmatprep.subr.bf16.mxu0 %v953
        %1284 = vmatpush1.bf16.msra.mxu0 %v952
        %1285 = vmatprep.subr.bf16.mxu0 %v961
        %1286 = vmatpush1.bf16.msra.mxu0 %v960
        %1287 = vmatprep.subr.bf16.mxu0 %v969
        %1288 = vmatpush1.bf16.msra.mxu0 %v968
        %1289 = vmatprep.subr.bf16.mxu0 %v977
        %1290 = vmatpush1.bf16.msra.mxu0 %v976
        %1291 = vmatprep.subr.bf16.mxu0 %v985
        %1292 = vmatpush1.bf16.msra.mxu0 %v984
        %1293 = vmatprep.subr.bf16.mxu0 %v993
        %1294 = vmatpush1.bf16.msra.mxu0 %v992
        %1295 = vmatprep.subr.bf16.mxu0 %v1001
        %1296 = vmatpush1.bf16.msra.mxu0 %v1000
        %1297 = vmatprep.subr.bf16.mxu0 %v1009
        %1298 = vmatpush1.bf16.msra.mxu0 %v1008
        %1299 = vmatprep.subr.bf16.mxu0 %v1017
        %1300 = vmatpush1.bf16.msra.mxu0 %v1016
        %1301 = vmatprep.mubr.bf16.mxu0 %v503
        %1302 = vmatmul.mubr.bf16.gmra.mrb[0].mxu0 %v502
        %v1303 = vpop.f32.mrb[0].mxu0
        %v1304 = vadd.f32 %v494, %v1303
        %v1305 = vpop.f32.mrb[0].mxu0
        %v1306 = vadd.f32 %v498, %v1305
        %v1307 = vpop.f32.mrb[0].mxu0
        %v1308 = vpop.f32.mrb[0].mxu0
        %1309 = vdwg.mxu0
        %v1310 = vld [vmem:[%s3] sm:$0x1]
        %v1311 = vunpack.c.l.bf16 %v1310
        %v1312 = vld [vmem:[%s4] sm:$0x1]
        %v1313 = vunpack.c.l.bf16 %v1312
        %1314 = vadd.xlane.f32.xlu0 %v1181
        %v1315 = vpop.xlane.xlu0 %1314
        %v1316 = vrcp.pop 128.0
        %v1317 = vmul.f32 %v1315, %v1316
        %v1318 = vsub.f32 %v1181, %v1317
        %v1319 = vmul.f32 %v1318, %v1318
        %1320 = vadd.xlane.f32.xlu0 %v1319
        %v1321 = vpop.xlane.xlu0 %1320
        %v1322 = vmul.f32 %v1321, %v1316
        %v1323 = vadd.f32 %v1322, 1e-05
        %v1324 = vrsqrt.pop %v1323
        %v1325 = vmul.f32 %v1318, %v1324
        %v1326 = vlaneseq
        %v1327 = vshrl.u32 %v1326, 7
        %v1328 = vsub.s32 0, %v1327
        %v1329 = vrot.slane %v1311, %v1328
        %v1330 = vmul.f32 %v1325, %v1329
        %v1331 = vlaneseq
        %v1332 = vshrl.u32 %v1331, 7
        %v1333 = vsub.s32 0, %v1332
        %v1334 = vrot.slane %v1313, %v1333
        %v1335 = vadd.f32 %v1330, %v1334
        %v1336 = vpack.c.bf16 %v1335, %v1335
        %v1339 = vunpack.c.l.s4 1966171168
        %v1340 = vunpack.c.0.s8 %v1339
        %v1341 = vlaneseq
        %v1342 = vshrl.u32 %v1341, 7
        %v1343 = vsub.s32 %v1340, %v1342
        %v1344 = vrot.slane %v1336, %v1343
        %v1345 = vcombine.high %v1344, %v1344
        %v1347 = vunpack.c.l.s4 1966171168
        %v1348 = vunpack.c.0.s8 %v1347
        %v1349 = vlaneseq
        %v1350 = vshrl.u32 %v1349, 7
        %v1351 = vsub.s32 %v1348, %v1350
        %v1352 = vrot.slane %v1344, %v1351
        %v1354 = vunpack.c.l.s4 1966171168
        %v1355 = vunpack.c.0.s8 %v1354
        %v1356 = vlaneseq
        %v1357 = vshrl.u32 %v1356, 7
        %v1358 = vsub.s32 %v1355, %v1357
        %v1359 = vrot.slane %v1345, %v1358
        %v1360 = vcombine.high %v1352, %v1352
        %v1361 = vcombine.high %v1359, %v1359
        %v1362 = vunpack.i.l.s16 %v1352
        %v1363 = vunpack.i.h.s16 %v1352
        %v1364 = vunpack.i.l.s16 %v1359
        %v1365 = vunpack.i.h.s16 %v1359
        %v1366 = vunpack.i.l.s16 %v1360
        %v1367 = vunpack.i.h.s16 %v1360
        %v1368 = vunpack.i.l.s16 %v1361
        %v1369 = vunpack.i.h.s16 %v1361
        %v1370 = vpack.i.b16 %v1362, %v1362
        %v1371 = vpack.i.b16 %v1363, %v1363
        %v1372 = vpack.i.b16 %v1364, %v1364
        %v1373 = vpack.i.b16 %v1365, %v1365
        %v1374 = vpack.i.b16 %v1366, %v1366
        %v1375 = vpack.i.b16 %v1367, %v1367
        %v1376 = vpack.i.b16 %v1368, %v1368
        %v1377 = vpack.i.b16 %v1369, %v1369
        %v1379 = vunpack.c.l.s4 286326784
        %v1380 = vunpack.c.0.s8 %v1379
        %v1381 = vlaneseq
        %v1382 = vshrl.u32 %v1381, 7
        %v1383 = vsub.s32 %v1380, %v1382
        %v1384 = vrot.slane %v1370, %v1383
        %v1386 = vunpack.c.l.s4 286326784
        %v1387 = vunpack.c.0.s8 %v1386
        %v1388 = vlaneseq
        %v1389 = vshrl.u32 %v1388, 7
        %v1390 = vsub.s32 %v1387, %v1389
        %v1391 = vrot.slane %v1371, %v1390
        %v1393 = vunpack.c.l.s4 286326784
        %v1394 = vunpack.c.0.s8 %v1393
        %v1395 = vlaneseq
        %v1396 = vshrl.u32 %v1395, 7
        %v1397 = vsub.s32 %v1394, %v1396
        %v1398 = vrot.slane %v1372, %v1397
        %v1400 = vunpack.c.l.s4 286326784
        %v1401 = vunpack.c.0.s8 %v1400
        %v1402 = vlaneseq
        %v1403 = vshrl.u32 %v1402, 7
        %v1404 = vsub.s32 %v1401, %v1403
        %v1405 = vrot.slane %v1373, %v1404
        %v1407 = vunpack.c.l.s4 286326784
        %v1408 = vunpack.c.0.s8 %v1407
        %v1409 = vlaneseq
        %v1410 = vshrl.u32 %v1409, 7
        %v1411 = vsub.s32 %v1408, %v1410
        %v1412 = vrot.slane %v1374, %v1411
        %v1414 = vunpack.c.l.s4 286326784
        %v1415 = vunpack.c.0.s8 %v1414
        %v1416 = vlaneseq
        %v1417 = vshrl.u32 %v1416, 7
        %v1418 = vsub.s32 %v1415, %v1417
        %v1419 = vrot.slane %v1375, %v1418
        %v1421 = vunpack.c.l.s4 286326784
        %v1422 = vunpack.c.0.s8 %v1421
        %v1423 = vlaneseq
        %v1424 = vshrl.u32 %v1423, 7
        %v1425 = vsub.s32 %v1422, %v1424
        %v1426 = vrot.slane %v1376, %v1425
        %v1428 = vunpack.c.l.s4 286326784
        %v1429 = vunpack.c.0.s8 %v1428
        %v1430 = vlaneseq
        %v1431 = vshrl.u32 %v1430, 7
        %v1432 = vsub.s32 %v1429, %v1431
        %v1433 = vrot.slane %v1377, %v1432
        %vm1442 = vcmask 1040384
        %vm1443 = vsmask.f32 256
        %vm1444 = vmand %vm1442, %vm1443
        %v1445 = vld [vmem:[%s290] sm:$0x1]
        %v1446 = vsel %vm1444, %v1384, %v1445
        %1447 = vst [vmem:[%s290] sm:$0x1] %v1446
        %v1448 = vld [vmem:[%s290 + $0x4] sm:$0x1]
        %v1449 = vsel %vm1444, %v1391, %v1448
        %1450 = vst [vmem:[%s290 + $0x4] sm:$0x1] %v1449
        %v1451 = vld [vmem:[%s290 + $0x8] sm:$0x1]
        %v1452 = vsel %vm1444, %v1398, %v1451
        %1453 = vst [vmem:[%s290 + $0x8] sm:$0x1] %v1452
        %v1454 = vld [vmem:[%s290 + $0xc] sm:$0x1]
        %v1455 = vsel %vm1444, %v1405, %v1454
        %1456 = vst [vmem:[%s290 + $0xc] sm:$0x1] %v1455
        %v1457 = vld [vmem:[%s290 + $0x10] sm:$0x1]
        %v1458 = vsel %vm1444, %v1412, %v1457
        %1459 = vst [vmem:[%s290 + $0x10] sm:$0x1] %v1458
        %v1460 = vld [vmem:[%s290 + $0x14] sm:$0x1]
        %v1461 = vsel %vm1444, %v1419, %v1460
        %1462 = vst [vmem:[%s290 + $0x14] sm:$0x1] %v1461
        %v1463 = vld [vmem:[%s290 + $0x18] sm:$0x1]
        %v1464 = vsel %vm1444, %v1426, %v1463
        %1465 = vst [vmem:[%s290 + $0x18] sm:$0x1] %v1464
        %v1466 = vld [vmem:[%s290 + $0x1c] sm:$0x1]
        %v1467 = vsel %vm1444, %v1433, %v1466
        %1468 = vst [vmem:[%s290 + $0x1c] sm:$0x1] %v1467
        %1469 = vadd.xlane.f32.xlu0 %v1183
        %v1470 = vpop.xlane.xlu0 %1469
        %v1471 = vmul.f32 %v1470, %v1316
        %v1472 = vsub.f32 %v1183, %v1471
        %v1473 = vmul.f32 %v1472, %v1472
        %1474 = vadd.xlane.f32.xlu0 %v1473
        %v1475 = vpop.xlane.xlu0 %1474
        %v1476 = vmul.f32 %v1475, %v1316
        %v1477 = vadd.f32 %v1476, 1e-05
        %v1478 = vrsqrt.pop %v1477
        %v1479 = vmul.f32 %v1472, %v1478
        %v1480 = vmul.f32 %v1479, %v1329
        %v1481 = vadd.f32 %v1480, %v1334
        %v1482 = vpack.c.bf16 %v1481, %v1481
        %v1485 = vunpack.c.l.s4 1966171168
        %v1486 = vunpack.c.0.s8 %v1485
        %v1487 = vlaneseq
        %v1488 = vshrl.u32 %v1487, 7
        %v1489 = vsub.s32 %v1486, %v1488
        %v1490 = vrot.slane %v1482, %v1489
        %v1491 = vcombine.high %v1490, %v1490
        %v1493 = vunpack.c.l.s4 1966171168
        %v1494 = vunpack.c.0.s8 %v1493
        %v1495 = vlaneseq
        %v1496 = vshrl.u32 %v1495, 7
        %v1497 = vsub.s32 %v1494, %v1496
        %v1498 = vrot.slane %v1490, %v1497
        %v1500 = vunpack.c.l.s4 1966171168
        %v1501 = vunpack.c.0.s8 %v1500
        %v1502 = vlaneseq
        %v1503 = vshrl.u32 %v1502, 7
        %v1504 = vsub.s32 %v1501, %v1503
        %v1505 = vrot.slane %v1491, %v1504
        %v1506 = vcombine.high %v1498, %v1498
        %v1507 = vcombine.high %v1505, %v1505
        %v1508 = vunpack.i.l.s16 %v1498
        %v1509 = vunpack.i.h.s16 %v1498
        %v1510 = vunpack.i.l.s16 %v1505
        %v1511 = vunpack.i.h.s16 %v1505
        %v1512 = vunpack.i.l.s16 %v1506
        %v1513 = vunpack.i.h.s16 %v1506
        %v1514 = vunpack.i.l.s16 %v1507
        %v1515 = vunpack.i.h.s16 %v1507
        %v1516 = vpack.i.b16 %v1508, %v1508
        %v1517 = vpack.i.b16 %v1509, %v1509
        %v1518 = vpack.i.b16 %v1510, %v1510
        %v1519 = vpack.i.b16 %v1511, %v1511
        %v1520 = vpack.i.b16 %v1512, %v1512
        %v1521 = vpack.i.b16 %v1513, %v1513
        %v1522 = vpack.i.b16 %v1514, %v1514
        %v1523 = vpack.i.b16 %v1515, %v1515
        %v1525 = vunpack.c.l.s4 286326784
        %v1526 = vunpack.c.0.s8 %v1525
        %v1527 = vlaneseq
        %v1528 = vshrl.u32 %v1527, 7
        %v1529 = vsub.s32 %v1526, %v1528
        %v1530 = vrot.slane %v1516, %v1529
        %v1532 = vunpack.c.l.s4 286326784
        %v1533 = vunpack.c.0.s8 %v1532
        %v1534 = vlaneseq
        %v1535 = vshrl.u32 %v1534, 7
        %v1536 = vsub.s32 %v1533, %v1535
        %v1537 = vrot.slane %v1517, %v1536
        %v1539 = vunpack.c.l.s4 286326784
        %v1540 = vunpack.c.0.s8 %v1539
        %v1541 = vlaneseq
        %v1542 = vshrl.u32 %v1541, 7
        %v1543 = vsub.s32 %v1540, %v1542
        %v1544 = vrot.slane %v1518, %v1543
        %v1546 = vunpack.c.l.s4 286326784
        %v1547 = vunpack.c.0.s8 %v1546
        %v1548 = vlaneseq
        %v1549 = vshrl.u32 %v1548, 7
        %v1550 = vsub.s32 %v1547, %v1549
        %v1551 = vrot.slane %v1519, %v1550
        %v1553 = vunpack.c.l.s4 286326784
        %v1554 = vunpack.c.0.s8 %v1553
        %v1555 = vlaneseq
        %v1556 = vshrl.u32 %v1555, 7
        %v1557 = vsub.s32 %v1554, %v1556
        %v1558 = vrot.slane %v1520, %v1557
        %v1560 = vunpack.c.l.s4 286326784
        %v1561 = vunpack.c.0.s8 %v1560
        %v1562 = vlaneseq
        %v1563 = vshrl.u32 %v1562, 7
        %v1564 = vsub.s32 %v1561, %v1563
        %v1565 = vrot.slane %v1521, %v1564
        %v1567 = vunpack.c.l.s4 286326784
        %v1568 = vunpack.c.0.s8 %v1567
        %v1569 = vlaneseq
        %v1570 = vshrl.u32 %v1569, 7
        %v1571 = vsub.s32 %v1568, %v1570
        %v1572 = vrot.slane %v1522, %v1571
        %v1574 = vunpack.c.l.s4 286326784
        %v1575 = vunpack.c.0.s8 %v1574
        %v1576 = vlaneseq
        %v1577 = vshrl.u32 %v1576, 7
        %v1578 = vsub.s32 %v1575, %v1577
        %v1579 = vrot.slane %v1523, %v1578
        %vm1588 = vsmask.f32 7938
        %vm1589 = vmand %vm1442, %vm1588
        %v1590 = vld [vmem:[%s290] sm:$0x1]
        %v1591 = vsel %vm1589, %v1530, %v1590
        %1592 = vst [vmem:[%s290] sm:$0x1] %v1591
        %v1593 = vld [vmem:[%s290 + $0x4] sm:$0x1]
        %v1594 = vsel %vm1589, %v1537, %v1593
        %1595 = vst [vmem:[%s290 + $0x4] sm:$0x1] %v1594
        %v1596 = vld [vmem:[%s290 + $0x8] sm:$0x1]
        %v1597 = vsel %vm1589, %v1544, %v1596
        %1598 = vst [vmem:[%s290 + $0x8] sm:$0x1] %v1597
        %v1599 = vld [vmem:[%s290 + $0xc] sm:$0x1]
        %v1600 = vsel %vm1589, %v1551, %v1599
        %1601 = vst [vmem:[%s290 + $0xc] sm:$0x1] %v1600
        %v1602 = vld [vmem:[%s290 + $0x10] sm:$0x1]
        %v1603 = vsel %vm1589, %v1558, %v1602
        %1604 = vst [vmem:[%s290 + $0x10] sm:$0x1] %v1603
        %v1605 = vld [vmem:[%s290 + $0x14] sm:$0x1]
        %v1606 = vsel %vm1589, %v1565, %v1605
        %1607 = vst [vmem:[%s290 + $0x14] sm:$0x1] %v1606
        %v1608 = vld [vmem:[%s290 + $0x18] sm:$0x1]
        %v1609 = vsel %vm1589, %v1572, %v1608
        %1610 = vst [vmem:[%s290 + $0x18] sm:$0x1] %v1609
        %v1611 = vld [vmem:[%s290 + $0x1c] sm:$0x1]
        %v1612 = vsel %vm1589, %v1579, %v1611
        %1613 = vst [vmem:[%s290 + $0x1c] sm:$0x1] %v1612
        %1614 = vadd.xlane.f32.xlu0 %v1222
        %v1615 = vpop.xlane.xlu0 %1614
        %v1616 = vmul.f32 %v1615, %v1316
        %v1617 = vsub.f32 %v1222, %v1616
        %v1618 = vmul.f32 %v1617, %v1617
        %1619 = vadd.xlane.f32.xlu0 %v1618
        %v1620 = vpop.xlane.xlu0 %1619
        %v1621 = vmul.f32 %v1620, %v1316
        %v1622 = vadd.f32 %v1621, 1e-05
        %v1623 = vrsqrt.pop %v1622
        %v1624 = vmul.f32 %v1617, %v1623
        %v1625 = vmul.f32 %v1624, %v1329
        %v1626 = vadd.f32 %v1625, %v1334
        %v1627 = vpack.c.bf16 %v1626, %v1626
        %v1630 = vunpack.c.l.s4 1966171168
        %v1631 = vunpack.c.0.s8 %v1630
        %v1632 = vlaneseq
        %v1633 = vshrl.u32 %v1632, 7
        %v1634 = vsub.s32 %v1631, %v1633
        %v1635 = vrot.slane %v1627, %v1634
        %v1636 = vcombine.high %v1635, %v1635
        %v1638 = vunpack.c.l.s4 1966171168
        %v1639 = vunpack.c.0.s8 %v1638
        %v1640 = vlaneseq
        %v1641 = vshrl.u32 %v1640, 7
        %v1642 = vsub.s32 %v1639, %v1641
        %v1643 = vrot.slane %v1635, %v1642
        %v1645 = vunpack.c.l.s4 1966171168
        %v1646 = vunpack.c.0.s8 %v1645
        %v1647 = vlaneseq
        %v1648 = vshrl.u32 %v1647, 7
        %v1649 = vsub.s32 %v1646, %v1648
        %v1650 = vrot.slane %v1636, %v1649
        %v1651 = vcombine.high %v1643, %v1643
        %v1652 = vcombine.high %v1650, %v1650
        %v1653 = vunpack.i.l.s16 %v1643
        %v1654 = vunpack.i.h.s16 %v1643
        %v1655 = vunpack.i.l.s16 %v1650
        %v1656 = vunpack.i.h.s16 %v1650
        %v1657 = vunpack.i.l.s16 %v1651
        %v1658 = vunpack.i.h.s16 %v1651
        %v1659 = vunpack.i.l.s16 %v1652
        %v1660 = vunpack.i.h.s16 %v1652
        %v1661 = vpack.i.b16 %v1653, %v1653
        %v1662 = vpack.i.b16 %v1654, %v1654
        %v1663 = vpack.i.b16 %v1655, %v1655
        %v1664 = vpack.i.b16 %v1656, %v1656
        %v1665 = vpack.i.b16 %v1657, %v1657
        %v1666 = vpack.i.b16 %v1658, %v1658
        %v1667 = vpack.i.b16 %v1659, %v1659
        %v1668 = vpack.i.b16 %v1660, %v1660
        %v1670 = vunpack.c.l.s4 286326784
        %v1671 = vunpack.c.0.s8 %v1670
        %v1672 = vlaneseq
        %v1673 = vshrl.u32 %v1672, 7
        %v1674 = vsub.s32 %v1671, %v1673
        %v1675 = vrot.slane %v1661, %v1674
        %v1677 = vunpack.c.l.s4 286326784
        %v1678 = vunpack.c.0.s8 %v1677
        %v1679 = vlaneseq
        %v1680 = vshrl.u32 %v1679, 7
        %v1681 = vsub.s32 %v1678, %v1680
        %v1682 = vrot.slane %v1662, %v1681
        %v1684 = vunpack.c.l.s4 286326784
        %v1685 = vunpack.c.0.s8 %v1684
        %v1686 = vlaneseq
        %v1687 = vshrl.u32 %v1686, 7
        %v1688 = vsub.s32 %v1685, %v1687
        %v1689 = vrot.slane %v1663, %v1688
        %v1691 = vunpack.c.l.s4 286326784
        %v1692 = vunpack.c.0.s8 %v1691
        %v1693 = vlaneseq
        %v1694 = vshrl.u32 %v1693, 7
        %v1695 = vsub.s32 %v1692, %v1694
        %v1696 = vrot.slane %v1664, %v1695
        %v1698 = vunpack.c.l.s4 286326784
        %v1699 = vunpack.c.0.s8 %v1698
        %v1700 = vlaneseq
        %v1701 = vshrl.u32 %v1700, 7
        %v1702 = vsub.s32 %v1699, %v1701
        %v1703 = vrot.slane %v1665, %v1702
        %v1705 = vunpack.c.l.s4 286326784
        %v1706 = vunpack.c.0.s8 %v1705
        %v1707 = vlaneseq
        %v1708 = vshrl.u32 %v1707, 7
        %v1709 = vsub.s32 %v1706, %v1708
        %v1710 = vrot.slane %v1666, %v1709
        %v1712 = vunpack.c.l.s4 286326784
        %v1713 = vunpack.c.0.s8 %v1712
        %v1714 = vlaneseq
        %v1715 = vshrl.u32 %v1714, 7
        %v1716 = vsub.s32 %v1713, %v1715
        %v1717 = vrot.slane %v1667, %v1716
        %v1719 = vunpack.c.l.s4 286326784
        %v1720 = vunpack.c.0.s8 %v1719
        %v1721 = vlaneseq
        %v1722 = vshrl.u32 %v1721, 7
        %v1723 = vsub.s32 %v1720, %v1722
        %v1724 = vrot.slane %v1668, %v1723
        %vm1733 = vcmask 1041409
        %vm1734 = vsmask.f32 1280
        %vm1735 = vmand %vm1733, %vm1734
        %v1736 = vld [vmem:[%s290] sm:$0x2]
        %v1737 = vsel %vm1735, %v1675, %v1736
        %1738 = vst [vmem:[%s290] sm:$0x2] %v1737
        %v1739 = vld [vmem:[%s290 + $0x4] sm:$0x2]
        %v1740 = vsel %vm1735, %v1682, %v1739
        %1741 = vst [vmem:[%s290 + $0x4] sm:$0x2] %v1740
        %v1742 = vld [vmem:[%s290 + $0x8] sm:$0x2]
        %v1743 = vsel %vm1735, %v1689, %v1742
        %1744 = vst [vmem:[%s290 + $0x8] sm:$0x2] %v1743
        %v1745 = vld [vmem:[%s290 + $0xc] sm:$0x2]
        %v1746 = vsel %vm1735, %v1696, %v1745
        %1747 = vst [vmem:[%s290 + $0xc] sm:$0x2] %v1746
        %v1748 = vld [vmem:[%s290 + $0x10] sm:$0x2]
        %v1749 = vsel %vm1735, %v1703, %v1748
        %1750 = vst [vmem:[%s290 + $0x10] sm:$0x2] %v1749
        %v1751 = vld [vmem:[%s290 + $0x14] sm:$0x2]
        %v1752 = vsel %vm1735, %v1710, %v1751
        %1753 = vst [vmem:[%s290 + $0x14] sm:$0x2] %v1752
        %v1754 = vld [vmem:[%s290 + $0x18] sm:$0x2]
        %v1755 = vsel %vm1735, %v1717, %v1754
        %1756 = vst [vmem:[%s290 + $0x18] sm:$0x2] %v1755
        %v1757 = vld [vmem:[%s290 + $0x1c] sm:$0x2]
        %v1758 = vsel %vm1735, %v1724, %v1757
        %1759 = vst [vmem:[%s290 + $0x1c] sm:$0x2] %v1758
        %1760 = vadd.xlane.f32.xlu0 %v1224
        %v1761 = vpop.xlane.xlu0 %1760
        %v1762 = vmul.f32 %v1761, %v1316
        %v1763 = vsub.f32 %v1224, %v1762
        %v1764 = vmul.f32 %v1763, %v1763
        %1765 = vadd.xlane.f32.xlu0 %v1764
        %v1766 = vpop.xlane.xlu0 %1765
        %v1767 = vmul.f32 %v1766, %v1316
        %v1768 = vadd.f32 %v1767, 1e-05
        %v1769 = vrsqrt.pop %v1768
        %v1770 = vmul.f32 %v1763, %v1769
        %v1771 = vmul.f32 %v1770, %v1329
        %v1772 = vadd.f32 %v1771, %v1334
        %v1773 = vpack.c.bf16 %v1772, %v1772
        %v1776 = vunpack.c.l.s4 1966171168
        %v1777 = vunpack.c.0.s8 %v1776
        %v1778 = vlaneseq
        %v1779 = vshrl.u32 %v1778, 7
        %v1780 = vsub.s32 %v1777, %v1779
        %v1781 = vrot.slane %v1773, %v1780
        %v1782 = vcombine.high %v1781, %v1781
        %v1784 = vunpack.c.l.s4 1966171168
        %v1785 = vunpack.c.0.s8 %v1784
        %v1786 = vlaneseq
        %v1787 = vshrl.u32 %v1786, 7
        %v1788 = vsub.s32 %v1785, %v1787
        %v1789 = vrot.slane %v1781, %v1788
        %v1791 = vunpack.c.l.s4 1966171168
        %v1792 = vunpack.c.0.s8 %v1791
        %v1793 = vlaneseq
        %v1794 = vshrl.u32 %v1793, 7
        %v1795 = vsub.s32 %v1792, %v1794
        %v1796 = vrot.slane %v1782, %v1795
        %v1797 = vcombine.high %v1789, %v1789
        %v1798 = vcombine.high %v1796, %v1796
        %v1799 = vunpack.i.l.s16 %v1789
        %v1800 = vunpack.i.h.s16 %v1789
        %v1801 = vunpack.i.l.s16 %v1796
        %v1802 = vunpack.i.h.s16 %v1796
        %v1803 = vunpack.i.l.s16 %v1797
        %v1804 = vunpack.i.h.s16 %v1797
        %v1805 = vunpack.i.l.s16 %v1798
        %v1806 = vunpack.i.h.s16 %v1798
        %v1807 = vpack.i.b16 %v1799, %v1799
        %v1808 = vpack.i.b16 %v1800, %v1800
        %v1809 = vpack.i.b16 %v1801, %v1801
        %v1810 = vpack.i.b16 %v1802, %v1802
        %v1811 = vpack.i.b16 %v1803, %v1803
        %v1812 = vpack.i.b16 %v1804, %v1804
        %v1813 = vpack.i.b16 %v1805, %v1805
        %v1814 = vpack.i.b16 %v1806, %v1806
        %v1816 = vunpack.c.l.s4 286326784
        %v1817 = vunpack.c.0.s8 %v1816
        %v1818 = vlaneseq
        %v1819 = vshrl.u32 %v1818, 7
        %v1820 = vsub.s32 %v1817, %v1819
        %v1821 = vrot.slane %v1807, %v1820
        %v1823 = vunpack.c.l.s4 286326784
        %v1824 = vunpack.c.0.s8 %v1823
        %v1825 = vlaneseq
        %v1826 = vshrl.u32 %v1825, 7
        %v1827 = vsub.s32 %v1824, %v1826
        %v1828 = vrot.slane %v1808, %v1827
        %v1830 = vunpack.c.l.s4 286326784
        %v1831 = vunpack.c.0.s8 %v1830
        %v1832 = vlaneseq
        %v1833 = vshrl.u32 %v1832, 7
        %v1834 = vsub.s32 %v1831, %v1833
        %v1835 = vrot.slane %v1809, %v1834
        %v1837 = vunpack.c.l.s4 286326784
        %v1838 = vunpack.c.0.s8 %v1837
        %v1839 = vlaneseq
        %v1840 = vshrl.u32 %v1839, 7
        %v1841 = vsub.s32 %v1838, %v1840
        %v1842 = vrot.slane %v1810, %v1841
        %v1844 = vunpack.c.l.s4 286326784
        %v1845 = vunpack.c.0.s8 %v1844
        %v1846 = vlaneseq
        %v1847 = vshrl.u32 %v1846, 7
        %v1848 = vsub.s32 %v1845, %v1847
        %v1849 = vrot.slane %v1811, %v1848
        %v1851 = vunpack.c.l.s4 286326784
        %v1852 = vunpack.c.0.s8 %v1851
        %v1853 = vlaneseq
        %v1854 = vshrl.u32 %v1853, 7
        %v1855 = vsub.s32 %v1852, %v1854
        %v1856 = vrot.slane %v1812, %v1855
        %v1858 = vunpack.c.l.s4 286326784
        %v1859 = vunpack.c.0.s8 %v1858
        %v1860 = vlaneseq
        %v1861 = vshrl.u32 %v1860, 7
        %v1862 = vsub.s32 %v1859, %v1861
        %v1863 = vrot.slane %v1813, %v1862
        %v1865 = vunpack.c.l.s4 286326784
        %v1866 = vunpack.c.0.s8 %v1865
        %v1867 = vlaneseq
        %v1868 = vshrl.u32 %v1867, 7
        %v1869 = vsub.s32 %v1866, %v1868
        %v1870 = vrot.slane %v1814, %v1869
        %vm1879 = vsmask.f32 7942
        %vm1880 = vmand %vm1733, %vm1879
        %v1881 = vld [vmem:[%s290] sm:$0x2]
        %v1882 = vsel %vm1880, %v1821, %v1881
        %1883 = vst [vmem:[%s290] sm:$0x2] %v1882
        %v1884 = vld [vmem:[%s290 + $0x4] sm:$0x2]
        %v1885 = vsel %vm1880, %v1828, %v1884
        %1886 = vst [vmem:[%s290 + $0x4] sm:$0x2] %v1885
        %v1887 = vld [vmem:[%s290 + $0x8] sm:$0x2]
        %v1888 = vsel %vm1880, %v1835, %v1887
        %1889 = vst [vmem:[%s290 + $0x8] sm:$0x2] %v1888
        %v1890 = vld [vmem:[%s290 + $0xc] sm:$0x2]
        %v1891 = vsel %vm1880, %v1842, %v1890
        %1892 = vst [vmem:[%s290 + $0xc] sm:$0x2] %v1891
        %v1893 = vld [vmem:[%s290 + $0x10] sm:$0x2]
        %v1894 = vsel %vm1880, %v1849, %v1893
        %1895 = vst [vmem:[%s290 + $0x10] sm:$0x2] %v1894
        %v1896 = vld [vmem:[%s290 + $0x14] sm:$0x2]
        %v1897 = vsel %vm1880, %v1856, %v1896
        %1898 = vst [vmem:[%s290 + $0x14] sm:$0x2] %v1897
        %v1899 = vld [vmem:[%s290 + $0x18] sm:$0x2]
        %v1900 = vsel %vm1880, %v1863, %v1899
        %1901 = vst [vmem:[%s290 + $0x18] sm:$0x2] %v1900
        %v1902 = vld [vmem:[%s290 + $0x1c] sm:$0x2]
        %v1903 = vsel %vm1880, %v1870, %v1902
        %1904 = vst [vmem:[%s290 + $0x1c] sm:$0x2] %v1903
        %1905 = vadd.xlane.f32.xlu0 %v1263
        %v1906 = vpop.xlane.xlu0 %1905
        %v1907 = vmul.f32 %v1906, %v1316
        %v1908 = vsub.f32 %v1263, %v1907
        %v1909 = vmul.f32 %v1908, %v1908
        %1910 = vadd.xlane.f32.xlu0 %v1909
        %v1911 = vpop.xlane.xlu0 %1910
        %v1912 = vmul.f32 %v1911, %v1316
        %v1913 = vadd.f32 %v1912, 1e-05
        %v1914 = vrsqrt.pop %v1913
        %v1915 = vmul.f32 %v1908, %v1914
        %v1916 = vmul.f32 %v1915, %v1329
        %v1917 = vadd.f32 %v1916, %v1334
        %v1918 = vpack.c.bf16 %v1917, %v1917
        %v1921 = vunpack.c.l.s4 1966171168
        %v1922 = vunpack.c.0.s8 %v1921
        %v1923 = vlaneseq
        %v1924 = vshrl.u32 %v1923, 7
        %v1925 = vsub.s32 %v1922, %v1924
        %v1926 = vrot.slane %v1918, %v1925
        %v1927 = vcombine.high %v1926, %v1926
        %v1929 = vunpack.c.l.s4 1966171168
        %v1930 = vunpack.c.0.s8 %v1929
        %v1931 = vlaneseq
        %v1932 = vshrl.u32 %v1931, 7
        %v1933 = vsub.s32 %v1930, %v1932
        %v1934 = vrot.slane %v1926, %v1933
        %v1936 = vunpack.c.l.s4 1966171168
        %v1937 = vunpack.c.0.s8 %v1936
        %v1938 = vlaneseq
        %v1939 = vshrl.u32 %v1938, 7
        %v1940 = vsub.s32 %v1937, %v1939
        %v1941 = vrot.slane %v1927, %v1940
        %v1942 = vcombine.high %v1934, %v1934
        %v1943 = vcombine.high %v1941, %v1941
        %v1944 = vunpack.i.l.s16 %v1934
        %v1945 = vunpack.i.h.s16 %v1934
        %v1946 = vunpack.i.l.s16 %v1941
        %v1947 = vunpack.i.h.s16 %v1941
        %v1948 = vunpack.i.l.s16 %v1942
        %v1949 = vunpack.i.h.s16 %v1942
        %v1950 = vunpack.i.l.s16 %v1943
        %v1951 = vunpack.i.h.s16 %v1943
        %v1952 = vpack.i.b16 %v1944, %v1944
        %v1953 = vpack.i.b16 %v1945, %v1945
        %v1954 = vpack.i.b16 %v1946, %v1946
        %v1955 = vpack.i.b16 %v1947, %v1947
        %v1956 = vpack.i.b16 %v1948, %v1948
        %v1957 = vpack.i.b16 %v1949, %v1949
        %v1958 = vpack.i.b16 %v1950, %v1950
        %v1959 = vpack.i.b16 %v1951, %v1951
        %v1961 = vunpack.c.l.s4 286326784
        %v1962 = vunpack.c.0.s8 %v1961
        %v1963 = vlaneseq
        %v1964 = vshrl.u32 %v1963, 7
        %v1965 = vsub.s32 %v1962, %v1964
        %v1966 = vrot.slane %v1952, %v1965
        %v1968 = vunpack.c.l.s4 286326784
        %v1969 = vunpack.c.0.s8 %v1968
        %v1970 = vlaneseq
        %v1971 = vshrl.u32 %v1970, 7
        %v1972 = vsub.s32 %v1969, %v1971
        %v1973 = vrot.slane %v1953, %v1972
        %v1975 = vunpack.c.l.s4 286326784
        %v1976 = vunpack.c.0.s8 %v1975
        %v1977 = vlaneseq
        %v1978 = vshrl.u32 %v1977, 7
        %v1979 = vsub.s32 %v1976, %v1978
        %v1980 = vrot.slane %v1954, %v1979
        %v1982 = vunpack.c.l.s4 286326784
        %v1983 = vunpack.c.0.s8 %v1982
        %v1984 = vlaneseq
        %v1985 = vshrl.u32 %v1984, 7
        %v1986 = vsub.s32 %v1983, %v1985
        %v1987 = vrot.slane %v1955, %v1986
        %v1989 = vunpack.c.l.s4 286326784
        %v1990 = vunpack.c.0.s8 %v1989
        %v1991 = vlaneseq
        %v1992 = vshrl.u32 %v1991, 7
        %v1993 = vsub.s32 %v1990, %v1992
        %v1994 = vrot.slane %v1956, %v1993
        %v1996 = vunpack.c.l.s4 286326784
        %v1997 = vunpack.c.0.s8 %v1996
        %v1998 = vlaneseq
        %v1999 = vshrl.u32 %v1998, 7
        %v2000 = vsub.s32 %v1997, %v1999
        %v2001 = vrot.slane %v1957, %v2000
        %v2003 = vunpack.c.l.s4 286326784
        %v2004 = vunpack.c.0.s8 %v2003
        %v2005 = vlaneseq
        %v2006 = vshrl.u32 %v2005, 7
        %v2007 = vsub.s32 %v2004, %v2006
        %v2008 = vrot.slane %v1958, %v2007
        %v2010 = vunpack.c.l.s4 286326784
        %v2011 = vunpack.c.0.s8 %v2010
        %v2012 = vlaneseq
        %v2013 = vshrl.u32 %v2012, 7
        %v2014 = vsub.s32 %v2011, %v2013
        %v2015 = vrot.slane %v1959, %v2014
        %vm2024 = vcmask 1042434
        %vm2025 = vsmask.f32 2304
        %vm2026 = vmand %vm2024, %vm2025
        %v2027 = vld [vmem:[%s290] sm:$0x4]
        %v2028 = vsel %vm2026, %v1966, %v2027
        %2029 = vst [vmem:[%s290] sm:$0x4] %v2028
        %v2030 = vld [vmem:[%s290 + $0x4] sm:$0x4]
        %v2031 = vsel %vm2026, %v1973, %v2030
        %2032 = vst [vmem:[%s290 + $0x4] sm:$0x4] %v2031
        %v2033 = vld [vmem:[%s290 + $0x8] sm:$0x4]
        %v2034 = vsel %vm2026, %v1980, %v2033
        %2035 = vst [vmem:[%s290 + $0x8] sm:$0x4] %v2034
        %v2036 = vld [vmem:[%s290 + $0xc] sm:$0x4]
        %v2037 = vsel %vm2026, %v1987, %v2036
        %2038 = vst [vmem:[%s290 + $0xc] sm:$0x4] %v2037
        %v2039 = vld [vmem:[%s290 + $0x10] sm:$0x4]
        %v2040 = vsel %vm2026, %v1994, %v2039
        %2041 = vst [vmem:[%s290 + $0x10] sm:$0x4] %v2040
        %v2042 = vld [vmem:[%s290 + $0x14] sm:$0x4]
        %v2043 = vsel %vm2026, %v2001, %v2042
        %2044 = vst [vmem:[%s290 + $0x14] sm:$0x4] %v2043
        %v2045 = vld [vmem:[%s290 + $0x18] sm:$0x4]
        %v2046 = vsel %vm2026, %v2008, %v2045
        %2047 = vst [vmem:[%s290 + $0x18] sm:$0x4] %v2046
        %v2048 = vld [vmem:[%s290 + $0x1c] sm:$0x4]
        %v2049 = vsel %vm2026, %v2015, %v2048
        %2050 = vst [vmem:[%s290 + $0x1c] sm:$0x4] %v2049
        %2051 = vadd.xlane.f32.xlu0 %v1265
        %v2052 = vpop.xlane.xlu0 %2051
        %v2053 = vmul.f32 %v2052, %v1316
        %v2054 = vsub.f32 %v1265, %v2053
        %v2055 = vmul.f32 %v2054, %v2054
        %2056 = vadd.xlane.f32.xlu0 %v2055
        %v2057 = vpop.xlane.xlu0 %2056
        %v2058 = vmul.f32 %v2057, %v1316
        %v2059 = vadd.f32 %v2058, 1e-05
        %v2060 = vrsqrt.pop %v2059
        %v2061 = vmul.f32 %v2054, %v2060
        %v2062 = vmul.f32 %v2061, %v1329
        %v2063 = vadd.f32 %v2062, %v1334
        %v2064 = vpack.c.bf16 %v2063, %v2063
        %v2067 = vunpack.c.l.s4 1966171168
        %v2068 = vunpack.c.0.s8 %v2067
        %v2069 = vlaneseq
        %v2070 = vshrl.u32 %v2069, 7
        %v2071 = vsub.s32 %v2068, %v2070
        %v2072 = vrot.slane %v2064, %v2071
        %v2073 = vcombine.high %v2072, %v2072
        %v2075 = vunpack.c.l.s4 1966171168
        %v2076 = vunpack.c.0.s8 %v2075
        %v2077 = vlaneseq
        %v2078 = vshrl.u32 %v2077, 7
        %v2079 = vsub.s32 %v2076, %v2078
        %v2080 = vrot.slane %v2072, %v2079
        %v2082 = vunpack.c.l.s4 1966171168
        %v2083 = vunpack.c.0.s8 %v2082
        %v2084 = vlaneseq
        %v2085 = vshrl.u32 %v2084, 7
        %v2086 = vsub.s32 %v2083, %v2085
        %v2087 = vrot.slane %v2073, %v2086
        %v2088 = vcombine.high %v2080, %v2080
        %v2089 = vcombine.high %v2087, %v2087
        %v2090 = vunpack.i.l.s16 %v2080
        %v2091 = vunpack.i.h.s16 %v2080
        %v2092 = vunpack.i.l.s16 %v2087
        %v2093 = vunpack.i.h.s16 %v2087
        %v2094 = vunpack.i.l.s16 %v2088
        %v2095 = vunpack.i.h.s16 %v2088
        %v2096 = vunpack.i.l.s16 %v2089
        %v2097 = vunpack.i.h.s16 %v2089
        %v2098 = vpack.i.b16 %v2090, %v2090
        %v2099 = vpack.i.b16 %v2091, %v2091
        %v2100 = vpack.i.b16 %v2092, %v2092
        %v2101 = vpack.i.b16 %v2093, %v2093
        %v2102 = vpack.i.b16 %v2094, %v2094
        %v2103 = vpack.i.b16 %v2095, %v2095
        %v2104 = vpack.i.b16 %v2096, %v2096
        %v2105 = vpack.i.b16 %v2097, %v2097
        %v2107 = vunpack.c.l.s4 286326784
        %v2108 = vunpack.c.0.s8 %v2107
        %v2109 = vlaneseq
        %v2110 = vshrl.u32 %v2109, 7
        %v2111 = vsub.s32 %v2108, %v2110
        %v2112 = vrot.slane %v2098, %v2111
        %v2114 = vunpack.c.l.s4 286326784
        %v2115 = vunpack.c.0.s8 %v2114
        %v2116 = vlaneseq
        %v2117 = vshrl.u32 %v2116, 7
        %v2118 = vsub.s32 %v2115, %v2117
        %v2119 = vrot.slane %v2099, %v2118
        %v2121 = vunpack.c.l.s4 286326784
        %v2122 = vunpack.c.0.s8 %v2121
        %v2123 = vlaneseq
        %v2124 = vshrl.u32 %v2123, 7
        %v2125 = vsub.s32 %v2122, %v2124
        %v2126 = vrot.slane %v2100, %v2125
        %v2128 = vunpack.c.l.s4 286326784
        %v2129 = vunpack.c.0.s8 %v2128
        %v2130 = vlaneseq
        %v2131 = vshrl.u32 %v2130, 7
        %v2132 = vsub.s32 %v2129, %v2131
        %v2133 = vrot.slane %v2101, %v2132
        %v2135 = vunpack.c.l.s4 286326784
        %v2136 = vunpack.c.0.s8 %v2135
        %v2137 = vlaneseq
        %v2138 = vshrl.u32 %v2137, 7
        %v2139 = vsub.s32 %v2136, %v2138
        %v2140 = vrot.slane %v2102, %v2139
        %v2142 = vunpack.c.l.s4 286326784
        %v2143 = vunpack.c.0.s8 %v2142
        %v2144 = vlaneseq
        %v2145 = vshrl.u32 %v2144, 7
        %v2146 = vsub.s32 %v2143, %v2145
        %v2147 = vrot.slane %v2103, %v2146
        %v2149 = vunpack.c.l.s4 286326784
        %v2150 = vunpack.c.0.s8 %v2149
        %v2151 = vlaneseq
        %v2152 = vshrl.u32 %v2151, 7
        %v2153 = vsub.s32 %v2150, %v2152
        %v2154 = vrot.slane %v2104, %v2153
        %v2156 = vunpack.c.l.s4 286326784
        %v2157 = vunpack.c.0.s8 %v2156
        %v2158 = vlaneseq
        %v2159 = vshrl.u32 %v2158, 7
        %v2160 = vsub.s32 %v2157, %v2159
        %v2161 = vrot.slane %v2105, %v2160
        %vm2170 = vsmask.f32 7946
        %vm2171 = vmand %vm2024, %vm2170
        %v2172 = vld [vmem:[%s290] sm:$0x4]
        %v2173 = vsel %vm2171, %v2112, %v2172
        %2174 = vst [vmem:[%s290] sm:$0x4] %v2173
        %v2175 = vld [vmem:[%s290 + $0x4] sm:$0x4]
        %v2176 = vsel %vm2171, %v2119, %v2175
        %2177 = vst [vmem:[%s290 + $0x4] sm:$0x4] %v2176
        %v2178 = vld [vmem:[%s290 + $0x8] sm:$0x4]
        %v2179 = vsel %vm2171, %v2126, %v2178
        %2180 = vst [vmem:[%s290 + $0x8] sm:$0x4] %v2179
        %v2181 = vld [vmem:[%s290 + $0xc] sm:$0x4]
        %v2182 = vsel %vm2171, %v2133, %v2181
        %2183 = vst [vmem:[%s290 + $0xc] sm:$0x4] %v2182
        %v2184 = vld [vmem:[%s290 + $0x10] sm:$0x4]
        %v2185 = vsel %vm2171, %v2140, %v2184
        %2186 = vst [vmem:[%s290 + $0x10] sm:$0x4] %v2185
        %v2187 = vld [vmem:[%s290 + $0x14] sm:$0x4]
        %v2188 = vsel %vm2171, %v2147, %v2187
        %2189 = vst [vmem:[%s290 + $0x14] sm:$0x4] %v2188
        %v2190 = vld [vmem:[%s290 + $0x18] sm:$0x4]
        %v2191 = vsel %vm2171, %v2154, %v2190
        %2192 = vst [vmem:[%s290 + $0x18] sm:$0x4] %v2191
        %v2193 = vld [vmem:[%s290 + $0x1c] sm:$0x4]
        %v2194 = vsel %vm2171, %v2161, %v2193
        %2195 = vst [vmem:[%s290 + $0x1c] sm:$0x4] %v2194
        %2196 = vadd.xlane.f32.xlu0 %v1304
        %v2197 = vpop.xlane.xlu0 %2196
        %v2198 = vmul.f32 %v2197, %v1316
        %v2199 = vsub.f32 %v1304, %v2198
        %v2200 = vmul.f32 %v2199, %v2199
        %2201 = vadd.xlane.f32.xlu0 %v2200
        %v2202 = vpop.xlane.xlu0 %2201
        %v2203 = vmul.f32 %v2202, %v1316
        %v2204 = vadd.f32 %v2203, 1e-05
        %v2205 = vrsqrt.pop %v2204
        %v2206 = vmul.f32 %v2199, %v2205
        %v2207 = vmul.f32 %v2206, %v1329
        %v2208 = vadd.f32 %v2207, %v1334
        %v2209 = vpack.c.bf16 %v2208, %v2208
        %v2212 = vunpack.c.l.s4 1966171168
        %v2213 = vunpack.c.0.s8 %v2212
        %v2214 = vlaneseq
        %v2215 = vshrl.u32 %v2214, 7
        %v2216 = vsub.s32 %v2213, %v2215
        %v2217 = vrot.slane %v2209, %v2216
        %v2218 = vcombine.high %v2217, %v2217
        %v2220 = vunpack.c.l.s4 1966171168
        %v2221 = vunpack.c.0.s8 %v2220
        %v2222 = vlaneseq
        %v2223 = vshrl.u32 %v2222, 7
        %v2224 = vsub.s32 %v2221, %v2223
        %v2225 = vrot.slane %v2217, %v2224
        %v2227 = vunpack.c.l.s4 1966171168
        %v2228 = vunpack.c.0.s8 %v2227
        %v2229 = vlaneseq
        %v2230 = vshrl.u32 %v2229, 7
        %v2231 = vsub.s32 %v2228, %v2230
        %v2232 = vrot.slane %v2218, %v2231
        %v2233 = vcombine.high %v2225, %v2225
        %v2234 = vcombine.high %v2232, %v2232
        %v2235 = vunpack.i.l.s16 %v2225
        %v2236 = vunpack.i.h.s16 %v2225
        %v2237 = vunpack.i.l.s16 %v2232
        %v2238 = vunpack.i.h.s16 %v2232
        %v2239 = vunpack.i.l.s16 %v2233
        %v2240 = vunpack.i.h.s16 %v2233
        %v2241 = vunpack.i.l.s16 %v2234
        %v2242 = vunpack.i.h.s16 %v2234
        %v2243 = vpack.i.b16 %v2235, %v2235
        %v2244 = vpack.i.b16 %v2236, %v2236
        %v2245 = vpack.i.b16 %v2237, %v2237
        %v2246 = vpack.i.b16 %v2238, %v2238
        %v2247 = vpack.i.b16 %v2239, %v2239
        %v2248 = vpack.i.b16 %v2240, %v2240
        %v2249 = vpack.i.b16 %v2241, %v2241
        %v2250 = vpack.i.b16 %v2242, %v2242
        %v2252 = vunpack.c.l.s4 286326784
        %v2253 = vunpack.c.0.s8 %v2252
        %v2254 = vlaneseq
        %v2255 = vshrl.u32 %v2254, 7
        %v2256 = vsub.s32 %v2253, %v2255
        %v2257 = vrot.slane %v2243, %v2256
        %v2259 = vunpack.c.l.s4 286326784
        %v2260 = vunpack.c.0.s8 %v2259
        %v2261 = vlaneseq
        %v2262 = vshrl.u32 %v2261, 7
        %v2263 = vsub.s32 %v2260, %v2262
        %v2264 = vrot.slane %v2244, %v2263
        %v2266 = vunpack.c.l.s4 286326784
        %v2267 = vunpack.c.0.s8 %v2266
        %v2268 = vlaneseq
        %v2269 = vshrl.u32 %v2268, 7
        %v2270 = vsub.s32 %v2267, %v2269
        %v2271 = vrot.slane %v2245, %v2270
        %v2273 = vunpack.c.l.s4 286326784
        %v2274 = vunpack.c.0.s8 %v2273
        %v2275 = vlaneseq
        %v2276 = vshrl.u32 %v2275, 7
        %v2277 = vsub.s32 %v2274, %v2276
        %v2278 = vrot.slane %v2246, %v2277
        %v2280 = vunpack.c.l.s4 286326784
        %v2281 = vunpack.c.0.s8 %v2280
        %v2282 = vlaneseq
        %v2283 = vshrl.u32 %v2282, 7
        %v2284 = vsub.s32 %v2281, %v2283
        %v2285 = vrot.slane %v2247, %v2284
        %v2287 = vunpack.c.l.s4 286326784
        %v2288 = vunpack.c.0.s8 %v2287
        %v2289 = vlaneseq
        %v2290 = vshrl.u32 %v2289, 7
        %v2291 = vsub.s32 %v2288, %v2290
        %v2292 = vrot.slane %v2248, %v2291
        %v2294 = vunpack.c.l.s4 286326784
        %v2295 = vunpack.c.0.s8 %v2294
        %v2296 = vlaneseq
        %v2297 = vshrl.u32 %v2296, 7
        %v2298 = vsub.s32 %v2295, %v2297
        %v2299 = vrot.slane %v2249, %v2298
        %v2301 = vunpack.c.l.s4 286326784
        %v2302 = vunpack.c.0.s8 %v2301
        %v2303 = vlaneseq
        %v2304 = vshrl.u32 %v2303, 7
        %v2305 = vsub.s32 %v2302, %v2304
        %v2306 = vrot.slane %v2250, %v2305
        %vm2315 = vcmask 1043459
        %vm2316 = vsmask.f32 3328
        %vm2317 = vmand %vm2315, %vm2316
        %v2318 = vld [vmem:[%s290] sm:$0x8]
        %v2319 = vsel %vm2317, %v2257, %v2318
        %2320 = vst [vmem:[%s290] sm:$0x8] %v2319
        %v2321 = vld [vmem:[%s290 + $0x4] sm:$0x8]
        %v2322 = vsel %vm2317, %v2264, %v2321
        %2323 = vst [vmem:[%s290 + $0x4] sm:$0x8] %v2322
        %v2324 = vld [vmem:[%s290 + $0x8] sm:$0x8]
        %v2325 = vsel %vm2317, %v2271, %v2324
        %2326 = vst [vmem:[%s290 + $0x8] sm:$0x8] %v2325
        %v2327 = vld [vmem:[%s290 + $0xc] sm:$0x8]
        %v2328 = vsel %vm2317, %v2278, %v2327
        %2329 = vst [vmem:[%s290 + $0xc] sm:$0x8] %v2328
        %v2330 = vld [vmem:[%s290 + $0x10] sm:$0x8]
        %v2331 = vsel %vm2317, %v2285, %v2330
        %2332 = vst [vmem:[%s290 + $0x10] sm:$0x8] %v2331
        %v2333 = vld [vmem:[%s290 + $0x14] sm:$0x8]
        %v2334 = vsel %vm2317, %v2292, %v2333
        %2335 = vst [vmem:[%s290 + $0x14] sm:$0x8] %v2334
        %v2336 = vld [vmem:[%s290 + $0x18] sm:$0x8]
        %v2337 = vsel %vm2317, %v2299, %v2336
        %2338 = vst [vmem:[%s290 + $0x18] sm:$0x8] %v2337
        %v2339 = vld [vmem:[%s290 + $0x1c] sm:$0x8]
        %v2340 = vsel %vm2317, %v2306, %v2339
        %2341 = vst [vmem:[%s290 + $0x1c] sm:$0x8] %v2340
        %2342 = vadd.xlane.f32.xlu0 %v1306
        %v2343 = vpop.xlane.xlu0 %2342
        %v2344 = vmul.f32 %v2343, %v1316
        %v2345 = vsub.f32 %v1306, %v2344
        %v2346 = vmul.f32 %v2345, %v2345
        %2347 = vadd.xlane.f32.xlu0 %v2346
        %v2348 = vpop.xlane.xlu0 %2347
        %v2349 = vmul.f32 %v2348, %v1316
        %v2350 = vadd.f32 %v2349, 1e-05
        %v2351 = vrsqrt.pop %v2350
        %v2352 = vmul.f32 %v2345, %v2351
        %v2353 = vmul.f32 %v2352, %v1329
        %v2354 = vadd.f32 %v2353, %v1334
        %v2355 = vpack.c.bf16 %v2354, %v2354
        %v2358 = vunpack.c.l.s4 1966171168
        %v2359 = vunpack.c.0.s8 %v2358
        %v2360 = vlaneseq
        %v2361 = vshrl.u32 %v2360, 7
        %v2362 = vsub.s32 %v2359, %v2361
        %v2363 = vrot.slane %v2355, %v2362
        %v2364 = vcombine.high %v2363, %v2363
        %v2366 = vunpack.c.l.s4 1966171168
        %v2367 = vunpack.c.0.s8 %v2366
        %v2368 = vlaneseq
        %v2369 = vshrl.u32 %v2368, 7
        %v2370 = vsub.s32 %v2367, %v2369
        %v2371 = vrot.slane %v2363, %v2370
        %v2373 = vunpack.c.l.s4 1966171168
        %v2374 = vunpack.c.0.s8 %v2373
        %v2375 = vlaneseq
        %v2376 = vshrl.u32 %v2375, 7
        %v2377 = vsub.s32 %v2374, %v2376
        %v2378 = vrot.slane %v2364, %v2377
        %v2379 = vcombine.high %v2371, %v2371
        %v2380 = vcombine.high %v2378, %v2378
        %v2381 = vunpack.i.l.s16 %v2371
        %v2382 = vunpack.i.h.s16 %v2371
        %v2383 = vunpack.i.l.s16 %v2378
        %v2384 = vunpack.i.h.s16 %v2378
        %v2385 = vunpack.i.l.s16 %v2379
        %v2386 = vunpack.i.h.s16 %v2379
        %v2387 = vunpack.i.l.s16 %v2380
        %v2388 = vunpack.i.h.s16 %v2380
        %v2389 = vpack.i.b16 %v2381, %v2381
        %v2390 = vpack.i.b16 %v2382, %v2382
        %v2391 = vpack.i.b16 %v2383, %v2383
        %v2392 = vpack.i.b16 %v2384, %v2384
        %v2393 = vpack.i.b16 %v2385, %v2385
        %v2394 = vpack.i.b16 %v2386, %v2386
        %v2395 = vpack.i.b16 %v2387, %v2387
        %v2396 = vpack.i.b16 %v2388, %v2388
        %v2398 = vunpack.c.l.s4 286326784
        %v2399 = vunpack.c.0.s8 %v2398
        %v2400 = vlaneseq
        %v2401 = vshrl.u32 %v2400, 7
        %v2402 = vsub.s32 %v2399, %v2401
        %v2403 = vrot.slane %v2389, %v2402
        %v2405 = vunpack.c.l.s4 286326784
        %v2406 = vunpack.c.0.s8 %v2405
        %v2407 = vlaneseq
        %v2408 = vshrl.u32 %v2407, 7
        %v2409 = vsub.s32 %v2406, %v2408
        %v2410 = vrot.slane %v2390, %v2409
        %v2412 = vunpack.c.l.s4 286326784
        %v2413 = vunpack.c.0.s8 %v2412
        %v2414 = vlaneseq
        %v2415 = vshrl.u32 %v2414, 7
        %v2416 = vsub.s32 %v2413, %v2415
        %v2417 = vrot.slane %v2391, %v2416
        %v2419 = vunpack.c.l.s4 286326784
        %v2420 = vunpack.c.0.s8 %v2419
        %v2421 = vlaneseq
        %v2422 = vshrl.u32 %v2421, 7
        %v2423 = vsub.s32 %v2420, %v2422
        %v2424 = vrot.slane %v2392, %v2423
        %v2426 = vunpack.c.l.s4 286326784
        %v2427 = vunpack.c.0.s8 %v2426
        %v2428 = vlaneseq
        %v2429 = vshrl.u32 %v2428, 7
        %v2430 = vsub.s32 %v2427, %v2429
        %v2431 = vrot.slane %v2393, %v2430
        %v2433 = vunpack.c.l.s4 286326784
        %v2434 = vunpack.c.0.s8 %v2433
        %v2435 = vlaneseq
        %v2436 = vshrl.u32 %v2435, 7
        %v2437 = vsub.s32 %v2434, %v2436
        %v2438 = vrot.slane %v2394, %v2437
        %v2440 = vunpack.c.l.s4 286326784
        %v2441 = vunpack.c.0.s8 %v2440
        %v2442 = vlaneseq
        %v2443 = vshrl.u32 %v2442, 7
        %v2444 = vsub.s32 %v2441, %v2443
        %v2445 = vrot.slane %v2395, %v2444
        %v2447 = vunpack.c.l.s4 286326784
        %v2448 = vunpack.c.0.s8 %v2447
        %v2449 = vlaneseq
        %v2450 = vshrl.u32 %v2449, 7
        %v2451 = vsub.s32 %v2448, %v2450
        %v2452 = vrot.slane %v2396, %v2451
        %vm2461 = vsmask.f32 7950
        %vm2462 = vmand %vm2315, %vm2461
        %v2463 = vld [vmem:[%s290] sm:$0x8]
        %v2464 = vsel %vm2462, %v2403, %v2463
        %2465 = vst [vmem:[%s290] sm:$0x8] %v2464
        %v2466 = vld [vmem:[%s290 + $0x4] sm:$0x8]
        %v2467 = vsel %vm2462, %v2410, %v2466
        %2468 = vst [vmem:[%s290 + $0x4] sm:$0x8] %v2467
        %v2469 = vld [vmem:[%s290 + $0x8] sm:$0x8]
        %v2470 = vsel %vm2462, %v2417, %v2469
        %2471 = vst [vmem:[%s290 + $0x8] sm:$0x8] %v2470
        %v2472 = vld [vmem:[%s290 + $0xc] sm:$0x8]
        %v2473 = vsel %vm2462, %v2424, %v2472
        %2474 = vst [vmem:[%s290 + $0xc] sm:$0x8] %v2473
        %v2475 = vld [vmem:[%s290 + $0x10] sm:$0x8]
        %v2476 = vsel %vm2462, %v2431, %v2475
        %2477 = vst [vmem:[%s290 + $0x10] sm:$0x8] %v2476
        %v2478 = vld [vmem:[%s290 + $0x14] sm:$0x8]
        %v2479 = vsel %vm2462, %v2438, %v2478
        %2480 = vst [vmem:[%s290 + $0x14] sm:$0x8] %v2479
        %v2481 = vld [vmem:[%s290 + $0x18] sm:$0x8]
        %v2482 = vsel %vm2462, %v2445, %v2481
        %2483 = vst [vmem:[%s290 + $0x18] sm:$0x8] %v2482
        %v2484 = vld [vmem:[%s290 + $0x1c] sm:$0x8]
        %v2485 = vsel %vm2462, %v2452, %v2484
        %2486 = vst [vmem:[%s290 + $0x1c] sm:$0x8] %v2485
        %s2487 = sand.u32 %s146, 1
        %s2488 = scalar_lea.sflag [#allocation4], %s2487
        %s2489 = sand.u32 %s146, 1
        %s2490 = smul.addr %s2489, 32
        %s2491 = scalar_lea.vmem [#allocation8], %s2490
        // Predicated region
        $region53: #{tpu_custom_call.1} parent=39 // pred_check
          %p2492 = pneg %p156
        $region54: #{tpu_custom_call.1} parent=39 // pred_check_branch
          %2494 = sbr.rel (%p2492) target = $region56
        $region55: #{tpu_custom_call.1} parent=39 // pred_region
          %s2496 = ssub.s32 512, 512
          %2497 = vsyncadd %s2488, %s2496
          %s2498 = smul.addr %s23, 64
          %s2499 = scalar_lea.hbm %s5, %s2498
          %s2500 = sshll.u32 %s2491, 4
          %s2501 = int_to_ptr.vmem [resolvable:$true] %s2500
          %2506 = dma.vmem_to_hbm [thread:$0]  %s2501, 512, %s2499, %s2488, 64, 128, 4
        $region56: #{tpu_custom_call.1} parent=39 // pred_fallthru
          _
      $region40: #{tpu_custom_call.1} parent=5 // pred_fallthru
        _
      %p2507 = scmp.le.s32.totalorder 2, %s18
      // Predicated region
      $region57: #{tpu_custom_call.1} parent=5 // pred_check
        %p2508 = pneg %p2507
      $region58: #{tpu_custom_call.1} parent=5 // pred_check_branch
        %2510 = sbr.rel (%p2508) target = $region60
      $region59: #{tpu_custom_call.1} parent=5 // pred_region
        %s2511 = ssub.s32 %s18, 2
        // Predicated region
        $region61: #{tpu_custom_call.1} parent=59 // pred_check
          %p2512 = pneg %p162
        $region62: #{tpu_custom_call.1} parent=59 // pred_check_branch
          %2514 = sbr.rel (%p2512) target = $region64
        $region63: #{tpu_custom_call.1} parent=59 // pred_region
          %s2515 = sand.u32 %s147, 1
          %s2516 = scalar_lea.sflag [#allocation4], %s2515
          %s2517 = sand.u32 %s147, 1
          %s2518 = smul.addr %s2517, 32
          %s2519 = scalar_lea.vmem [#allocation8], %s2518
          %2520 = dma.done %s2516, 512
        $region64: #{tpu_custom_call.1} parent=59 // pred_fallthru
          _
      $region60: #{tpu_custom_call.1} parent=5 // pred_fallthru
        _
    $region6: #{tpu_custom_call.1} parent=1 // loop_footer
      %s22 = sadd.s32 1, %s18
    $region7: #{tpu_custom_call.1} parent=1 // loop_footer_branch
      %17 = sbr.rel target = $region3
    $region8: #{tpu_custom_call.1} parent=1 // loop_exit
      _
    %2521 = vsyncpa [#allocation3], 1
    %s2522 = scalar_lea.sflag [#allocation3], 1
    %2523 = vsyncpa %s2522, 1
    %2524 = vsyncpa [#allocation6], 1
    %s2525 = scalar_lea.sflag [#allocation6], 1
    %2526 = vsyncpa %s2525, 1
    %2527 = vsyncpa [#allocation4], 1
    %s2528 = scalar_lea.sflag [#allocation4], 1
    %2529 = vsyncpa %s2528, 1

</llo_original>
